<compile_context>
chip_gen: v7x
topology: tpu7x:2x2x1
jax: 0.10.0
libtpu: 0.0.40
codegen_flags: <defaults>
</compile_context>

<pallas_src>
import functools

import jax
import jax.numpy as jnp
from jax import lax
from jax.experimental import pallas as pl
from jax.experimental.pallas import tpu as pltpu

LN_EPS = 1e-5  # PyTorch nn.LayerNorm default


def _layer_norm(x, gamma, beta):
    # x: (rows, D) f32; gamma/beta: (1, D) f32
    mean = jnp.mean(x, axis=-1, keepdims=True)
    var = jnp.mean((x - mean) ** 2, axis=-1, keepdims=True)
    inv = lax.rsqrt(var + LN_EPS)
    return (x - mean) * inv * gamma + beta


# Abramowitz & Stegun 7.1.26 erf approximation (max abs error ~1.5e-7).
# Built only from exp / mul / add / where so it is guaranteed to lower.
_ERF_P = 0.3275911
_ERF_A1 = 0.254829592
_ERF_A2 = -0.284496736
_ERF_A3 = 1.421413741
_ERF_A4 = -1.453152027
_ERF_A5 = 1.061405429


def _erf_approx(x):
    z = jnp.abs(x)
    t = 1.0 / (1.0 + _ERF_P * z)
    poly = t * (_ERF_A1 + t * (_ERF_A2 + t * (_ERF_A3 + t * (_ERF_A4 + t * _ERF_A5))))
    e = 1.0 - poly * jnp.exp(-(z * z))
    return jnp.where(x >= 0.0, e, -e)


def _gelu_exact(x):
    # PyTorch nn.GELU() default: exact erf-based GELU.
    return 0.5 * x * (1.0 + _erf_approx(x * 0.7071067811865476))


def transformer_stack_kernel(
    x_ref,
    ln1_g_ref, ln1_b_ref,
    wqkv_ref, bqkv_ref,
    wo_ref, bo_ref,
    ln2_g_ref, ln2_b_ref,
    w1_ref, b1_ref,
    w2_ref, b2_ref,
    o_ref,
    act_ref,                     # VMEM scratch: (Bt, N, D) f32, carried over depth
    *, heads, dim_head,
):
    layer = pl.program_id(1)

    @pl.when(layer == 0)
    def _():
        act_ref[...] = x_ref[...].astype(jnp.float32)

    Bt, N, D = act_ref.shape
    rows = Bt * N
    inner = heads * dim_head

    x2 = act_ref[...].reshape(rows, D)                        # (rows, D) f32

    # ---------------- Residual(PreNorm(Attention)) ----------------
    # (softmax scale is already folded into the Q columns of wqkv/bqkv)
    y = _layer_norm(x2, ln1_g_ref[0], ln1_b_ref[0])
    qkv = jnp.dot(y.astype(jnp.bfloat16), wqkv_ref[0],
                  preferred_element_type=jnp.float32) + bqkv_ref[0]   # (rows, 3*inner)

    def heads_view(base):
        # (rows, inner) column block -> (heads*Bt, N, dim_head), leading = h*Bt + b
        parts = [
            qkv[:, base + h * dim_head: base + (h + 1) * dim_head]
            .reshape(Bt, N, dim_head)
            for h in range(heads)
        ]
        return jnp.concatenate(parts, axis=0).astype(jnp.bfloat16)

    qh = heads_view(0)                                        # (H*Bt, N, dh) bf16
    kh = heads_view(inner)
    vh = heads_view(2 * inner)

    dots = jnp.einsum("bqd,bkd->bqk", qh, kh,
                      preferred_element_type=jnp.float32)     # (H*Bt, N, N) f32
    dots = dots - jnp.max(dots, axis=-1, keepdims=True)
    e = jnp.exp(dots)
    attn = e * pl.reciprocal(jnp.sum(e, axis=-1, keepdims=True), approx=True)
    ctx = jnp.einsum("bqk,bkd->bqd", attn.astype(jnp.bfloat16), vh,
                     preferred_element_type=jnp.float32)      # (H*Bt, N, dh) f32

    # Output projection: Wo is replicated per batch element on the host so the
    # leading index of wo_ref matches ctx (h*Bt + b) -> single batched einsum,
    # then sum the per-head contributions (concat_h(ctx_h) @ Wo == sum_h ctx_h @ Wo_h).
    proj = jnp.einsum("bnd,bdo->bno", ctx.astype(jnp.bfloat16), wo_ref[0],
                      preferred_element_type=jnp.float32)     # (H*Bt, N, D) f32
    attn_out = jnp.sum(proj.reshape(heads, Bt, N, D), axis=0)  # (Bt, N, D) f32
    x1 = x2 + attn_out.reshape(rows, D) + bo_ref[0]

    # ---------------- Residual(PreNorm(FeedForward)) ----------------
    y2 = _layer_norm(x1, ln2_g_ref[0], ln2_b_ref[0])
    h1 = jnp.dot(y2.astype(jnp.bfloat16), w1_ref[0],
                 preferred_element_type=jnp.float32) + b1_ref[0]
    h1 = _gelu_exact(h1)
    ff = jnp.dot(h1.astype(jnp.bfloat16), w2_ref[0],
                 preferred_element_type=jnp.float32) + b2_ref[0]

    new_x = (x1 + ff).reshape(Bt, N, D)
    act_ref[...] = new_x

    @pl.when(layer == pl.num_programs(1) - 1)
    def _():
        o_ref[...] = new_x.astype(o_ref.dtype)


def transformer_forward(x, layers_params, *, heads, dim_head, batch_block=None):
    """x: (B, N, D) float32; layers_params: list of per-layer weight dicts."""
    B, N, D = x.shape
    depth = len(layers_params)
    inner = heads * dim_head
    Bt = B if batch_block is None else min(batch_block, B)
    assert B % Bt == 0, "batch_block must divide batch"
    nb = B // Bt

    # ---- stack per-layer params along depth; fold softmax scale; bf16 weights ----
    scale = dim_head ** (-0.5)
    q_scale = jnp.concatenate(
        [jnp.full((inner,), scale, jnp.float32),
         jnp.ones((2 * inner,), jnp.float32)])

    def stack(name):
        return jnp.stack([p[name] for p in layers_params], axis=0)

    ln1_g, ln1_b = stack("ln1_g"), stack("ln1_b")                         # (depth, 1, D)
    ln2_g, ln2_b = stack("ln2_g"), stack("ln2_b")
    wqkv = (stack("wqkv") * q_scale[None, None, :]).astype(jnp.bfloat16)  # (depth, D, 3*inner)
    bqkv = stack("bqkv") * q_scale[None, None, :]                         # (depth, 1, 3*inner)
    # Wo per head, replicated Bt times so leading index = h*Bt + b matches the
    # head-batched context layout inside the kernel.
    wo = stack("wo").reshape(depth, heads, dim_head, D)
    wo_exp = jnp.repeat(wo, Bt, axis=1).astype(jnp.bfloat16)              # (depth, H*Bt, dh, D)
    bo = stack("bo")                                                      # (depth, 1, D)
    w1 = stack("w1").astype(jnp.bfloat16)                                 # (depth, D, mlp)
    b1 = stack("b1")                                                      # (depth, 1, mlp)
    w2 = stack("w2").astype(jnp.bfloat16)                                 # (depth, mlp, D)
    b2 = stack("b2")                                                      # (depth, 1, D)

    kernel = functools.partial(transformer_stack_kernel,
                               heads=heads, dim_head=dim_head)

    def wspec(shape):
        # per-layer block of a depth-stacked weight: block index follows the depth axis
        zeros = (0,) * (len(shape) - 1)
        return pl.BlockSpec((1,) + tuple(shape[1:]),
                            lambda b, l, z=zeros: (l,) + z)

    grid_spec = pltpu.PrefetchScalarGridSpec(
        num_scalar_prefetch=0,
        grid=(nb, depth),                 # depth innermost (sequential carry)
        in_specs=[
            pl.BlockSpec((Bt, N, D), lambda b, l: (b, 0, 0)),   # x (DMA'd once per batch block)
            wspec(ln1_g.shape), wspec(ln1_b.shape),
            wspec(wqkv.shape), wspec(bqkv.shape),
            wspec(wo_exp.shape), wspec(bo.shape),
            wspec(ln2_g.shape), wspec(ln2_b.shape),
            wspec(w1.shape), wspec(b1.shape),
            wspec(w2.shape), wspec(b2.shape),
        ],
        out_specs=pl.BlockSpec((Bt, N, D), lambda b, l: (b, 0, 0)),  # resident across depth
        scratch_shapes=[pltpu.VMEM((Bt, N, D), jnp.float32)],
    )

    return pl.pallas_call(
        kernel,
        out_shape=jax.ShapeDtypeStruct((B, N, D), jnp.float32),
        grid_spec=grid_spec,
        compiler_params=pltpu.CompilerParams(
            dimension_semantics=("parallel", "arbitrary")),
    )(x, ln1_g, ln1_b, wqkv, bqkv, wo_exp, bo, ln2_g, ln2_b, w1, b1, w2, b2)


# -------------------- pure-JAX f32 reference (sanity check) --------------------
def _ref_layer(x, p, heads, dim_head):
    def ln(v, g, b):
        m = jnp.mean(v, -1, keepdims=True)
        var = jnp.mean((v - m) ** 2, -1, keepdims=True)
        return (v - m) / jnp.sqrt(var + LN_EPS) * g + b

    B, N, D = x.shape
    inner = heads * dim_head
    y = ln(x, p["ln1_g"], p["ln1_b"])
    qkv = y @ p["wqkv"] + p["bqkv"]
    q, k, v = jnp.split(qkv, 3, axis=-1)
    rs = lambda t: t.reshape(B, N, heads, dim_head).transpose(0, 2, 1, 3)
    q, k, v = rs(q), rs(k), rs(v)
    dots = jnp.einsum("bhid,bhjd->bhij", q, k) * dim_head ** (-0.5)
    attn = jax.nn.softmax(dots, axis=-1)
    out = jnp.einsum("bhij,bhjd->bhid", attn, v)
    out = out.transpose(0, 2, 1, 3).reshape(B, N, inner)
    x1 = x + (out @ p["wo"] + p["bo"])
    y2 = ln(x1, p["ln2_g"], p["ln2_b"])
    h = y2 @ p["w1"] + p["b1"]
    h = 0.5 * h * (1.0 + lax.erf(h / jnp.sqrt(2.0)))
    return x1 + (h @ p["w2"] + p["b2"])


def _ref_forward(x, layers_params, heads, dim_head):
    for p in layers_params:
        x = _ref_layer(x, p, heads, dim_head)
    return x


# -------------------- parameter construction --------------------
def make_params(key, depth, dim, heads, dim_head, mlp_dim):
    inner = heads * dim_head
    layers = []
    for _ in range(depth):
        ks = jax.random.split(key, 7)
        key = ks[0]
        s = 0.05
        layers.append({
            "ln1_g": jnp.ones((1, dim), jnp.float32),
            "ln1_b": jnp.zeros((1, dim), jnp.float32),
            "wqkv": s * jax.random.normal(ks[1], (dim, 3 * inner), jnp.float32),
            "bqkv": s * jax.random.normal(ks[2], (1, 3 * inner), jnp.float32),
            "wo": s * jax.random.normal(ks[3], (inner, dim), jnp.float32),
            "bo": jnp.zeros((1, dim), jnp.float32),
            "ln2_g": jnp.ones((1, dim), jnp.float32),
            "ln2_b": jnp.zeros((1, dim), jnp.float32),
            "w1": s * jax.random.normal(ks[4], (dim, mlp_dim), jnp.float32),
            "b1": s * jax.random.normal(ks[5], (1, mlp_dim), jnp.float32),
            "w2": s * jax.random.normal(ks[6], (mlp_dim, dim), jnp.float32),
            "b2": jnp.zeros((1, dim), jnp.float32),
        })
    return layers


if __name__ == "__main__":
    # Small config: dim=32, depth=2, heads=4, dim_head=8, mlp_dim=64, dropout=0.0
    B, N, dim = 2, 8, 32
    depth, heads, dim_head, mlp_dim = 2, 4, 8, 64
    # TODO(synk): AreaAttention branch (aa_sizes non-empty) not implemented;
    #             default aa_sizes=None uses standard Attention in every layer.

    key = jax.random.PRNGKey(0)
    kx, kp = jax.random.split(key)
    x = jax.random.normal(kx, (B, N, dim), jnp.float32)
    layers_params = make_params(kp, depth, dim, heads, dim_head, mlp_dim)

    out = transformer_forward(x, layers_params, heads=heads, dim_head=dim_head)
    out = jax.block_until_ready(out)

    ref = _ref_forward(x, layers_params, heads, dim_head)
    assert out.shape == (B, N, dim)
    max_err = float(jnp.max(jnp.abs(out - ref)))
    # bf16 matmul operands + approx reciprocal + polynomial erf -> loose tolerance
    assert jnp.allclose(out, ref, rtol=5e-2, atol=5e-2), (
        f"mismatch vs reference (max abs err {max_err})")

    print("KERNEL_OK")
</pallas_src>

<mosaic_0001>
module attributes {stable_mosaic.version = 11 : i64} {
  func.func @transformer_stack_kernel(%arg0: i32, %arg1: i32, %arg2: memref<2x8x32xf32, #tpu.memory_space<vmem>>, %arg3: memref<1x1x32xf32, #tpu.memory_space<vmem>>, %arg4: memref<1x1x32xf32, #tpu.memory_space<vmem>>, %arg5: memref<1x32x96xbf16, #tpu.memory_space<vmem>>, %arg6: memref<1x1x96xf32, #tpu.memory_space<vmem>>, %arg7: memref<1x8x8x32xbf16, #tpu.memory_space<vmem>>, %arg8: memref<1x1x32xf32, #tpu.memory_space<vmem>>, %arg9: memref<1x1x32xf32, #tpu.memory_space<vmem>>, %arg10: memref<1x1x32xf32, #tpu.memory_space<vmem>>, %arg11: memref<1x32x64xbf16, #tpu.memory_space<vmem>>, %arg12: memref<1x1x64xf32, #tpu.memory_space<vmem>>, %arg13: memref<1x64x32xbf16, #tpu.memory_space<vmem>>, %arg14: memref<1x1x32xf32, #tpu.memory_space<vmem>>, %arg15: memref<2x8x32xf32, #tpu.memory_space<vmem>>, %arg16: memref<2x8x32xf32, #tpu.memory_space<vmem>>) attributes {dimension_semantics = [#tpu.dimension_semantics<parallel>, #tpu.dimension_semantics<arbitrary>], iteration_bounds = array<i64: 1, 2>, scalar_prefetch = 0 : i64, scratch_operands = 1 : i64, tpu.core_type = #tpu.core_type<tc>, window_params = [{transform_indices = @transform_0, window_bounds = array<i64: 2, 8, 32>}, {transform_indices = @transform_1, window_bounds = array<i64: 1, 1, 32>}, {transform_indices = @transform_2, window_bounds = array<i64: 1, 1, 32>}, {transform_indices = @transform_3, window_bounds = array<i64: 1, 32, 96>}, {transform_indices = @transform_4, window_bounds = array<i64: 1, 1, 96>}, {transform_indices = @transform_5, window_bounds = array<i64: 1, 8, 8, 32>}, {transform_indices = @transform_6, window_bounds = array<i64: 1, 1, 32>}, {transform_indices = @transform_7, window_bounds = array<i64: 1, 1, 32>}, {transform_indices = @transform_8, window_bounds = array<i64: 1, 1, 32>}, {transform_indices = @transform_9, window_bounds = array<i64: 1, 32, 64>}, {transform_indices = @transform_10, window_bounds = array<i64: 1, 1, 64>}, {transform_indices = @transform_11, window_bounds = array<i64: 1, 64, 32>}, {transform_indices = @transform_12, window_bounds = array<i64: 1, 1, 32>}, {transform_indices = @transform_13, window_bounds = array<i64: 2, 8, 32>}]} {
    %c0_i32 = arith.constant 0 : i32
    %0 = arith.cmpi eq, %arg1, %c0_i32 : i32
    %1 = arith.extui %0 : i1 to i32
    %c0_i32_0 = arith.constant 0 : i32
    %2 = arith.cmpi ne, %1, %c0_i32_0 : i32
    scf.if %2 {
      %c0_77 = arith.constant 0 : index
      %c0_78 = arith.constant 0 : index
      %c0_79 = arith.constant 0 : index
      %182 = vector.load %arg2[%c0_77, %c0_78, %c0_79] : memref<2x8x32xf32, #tpu.memory_space<vmem>>, vector<2x8x32xf32>
      %c0_80 = arith.constant 0 : index
      %c0_81 = arith.constant 0 : index
      %c0_82 = arith.constant 0 : index
      %183 = vector.load %arg16[%c0_80, %c0_81, %c0_82] : memref<2x8x32xf32, #tpu.memory_space<vmem>>, vector<2x8x32xf32>
      tpu.vector_store %arg16[%c0_80, %c0_81, %c0_82], %182 {strides = array<i32>} : memref<2x8x32xf32, #tpu.memory_space<vmem>>, vector<2x8x32xf32>,
    } else {
    }
    %c0 = arith.constant 0 : index
    %c0_1 = arith.constant 0 : index
    %c0_2 = arith.constant 0 : index
    %3 = vector.load %arg16[%c0, %c0_1, %c0_2] : memref<2x8x32xf32, #tpu.memory_space<vmem>>, vector<2x8x32xf32>
    %4 = vector.shape_cast %3 : vector<2x8x32xf32> to vector<16x32xf32>
    %c0_3 = arith.constant 0 : index
    %c0_4 = arith.constant 0 : index
    %c0_5 = arith.constant 0 : index
    %5 = vector.load %arg3[%c0_3, %c0_4, %c0_5] : memref<1x1x32xf32, #tpu.memory_space<vmem>>, vector<1x1x32xf32>
    %6 = vector.shape_cast %5 : vector<1x1x32xf32> to vector<1x32xf32>
    %c0_6 = arith.constant 0 : index
    %c0_7 = arith.constant 0 : index
    %c0_8 = arith.constant 0 : index
    %7 = vector.load %arg4[%c0_6, %c0_7, %c0_8] : memref<1x1x32xf32, #tpu.memory_space<vmem>>, vector<1x1x32xf32>
    %8 = vector.shape_cast %7 : vector<1x1x32xf32> to vector<1x32xf32>
    %cst = arith.constant dense<0.000000e+00> : vector<16xf32>
    %9 = vector.multi_reduction <add>, %4, %cst [1] : vector<16x32xf32> to vector<16xf32>
    %10 = vector.shape_cast %9 : vector<16xf32> to vector<16x1xf32>
    %cst_9 = arith.constant 3.200000e+01 : f32
    %11 = vector.broadcast %cst_9 : f32 to vector<16x1xf32>
    %12 = arith.divf %10, %11 : vector<16x1xf32>
    %13 = vector.broadcast %12 : vector<16x1xf32> to vector<16x32xf32>
    %14 = arith.subf %4, %13 : vector<16x32xf32>
    %15 = arith.mulf %14, %14 : vector<16x32xf32>
    %cst_10 = arith.constant dense<0.000000e+00> : vector<16xf32>
    %16 = vector.multi_reduction <add>, %15, %cst_10 [1] : vector<16x32xf32> to vector<16xf32>
    %17 = vector.shape_cast %16 : vector<16xf32> to vector<16x1xf32>
    %cst_11 = arith.constant 3.200000e+01 : f32
    %18 = vector.broadcast %cst_11 : f32 to vector<16x1xf32>
    %19 = arith.divf %17, %18 : vector<16x1xf32>
    %cst_12 = arith.constant 9.99999974E-6 : f32
    %20 = vector.broadcast %cst_12 : f32 to vector<16x1xf32>
    %21 = arith.addf %19, %20 : vector<16x1xf32>
    %22 = math.rsqrt %21 : vector<16x1xf32>
    %23 = vector.broadcast %12 : vector<16x1xf32> to vector<16x32xf32>
    %24 = arith.subf %4, %23 : vector<16x32xf32>
    %25 = vector.broadcast %22 : vector<16x1xf32> to vector<16x32xf32>
    %26 = arith.mulf %24, %25 : vector<16x32xf32>
    %27 = vector.broadcast %6 : vector<1x32xf32> to vector<16x32xf32>
    %28 = arith.mulf %26, %27 : vector<16x32xf32>
    %29 = vector.broadcast %8 : vector<1x32xf32> to vector<16x32xf32>
    %30 = arith.addf %28, %29 : vector<16x32xf32>
    %31 = arith.truncf %30 : vector<16x32xf32> to vector<16x32xbf16>
    %c0_13 = arith.constant 0 : index
    %c0_14 = arith.constant 0 : index
    %c0_15 = arith.constant 0 : index
    %32 = vector.load %arg5[%c0_13, %c0_14, %c0_15] : memref<1x32x96xbf16, #tpu.memory_space<vmem>>, vector<1x32x96xbf16>
    %33 = vector.shape_cast %32 : vector<1x32x96xbf16> to vector<32x96xbf16>
    %cst_16 = arith.constant dense<0.000000e+00> : vector<16x96xf32>
    %34 = tpu.matmul %31, %33, %cst_16 {dimension_numbers = #tpu.dot_dimension_numbers<[1], [0], [0], [1], [0, 0, 1, 1], [], []>} : vector<16x32xbf16>, vector<32x96xbf16>, vector<16x96xf32> -> vector<16x96xf32>
    %c0_17 = arith.constant 0 : index
    %c0_18 = arith.constant 0 : index
    %c0_19 = arith.constant 0 : index
    %35 = vector.load %arg6[%c0_17, %c0_18, %c0_19] : memref<1x1x96xf32, #tpu.memory_space<vmem>>, vector<1x1x96xf32>
    %36 = vector.shape_cast %35 : vector<1x1x96xf32> to vector<1x96xf32>
    %37 = vector.broadcast %36 : vector<1x96xf32> to vector<16x96xf32>
    %38 = arith.addf %34, %37 : vector<16x96xf32>
    %39 = vector.extract_strided_slice %38 {offsets = [0, 0], sizes = [16, 8], strides = [1, 1]} : vector<16x96xf32> to vector<16x8xf32>
    %40 = vector.shape_cast %39 : vector<16x8xf32> to vector<2x8x8xf32>
    %41 = vector.extract_strided_slice %38 {offsets = [0, 8], sizes = [16, 8], strides = [1, 1]} : vector<16x96xf32> to vector<16x8xf32>
    %42 = vector.shape_cast %41 : vector<16x8xf32> to vector<2x8x8xf32>
    %43 = vector.extract_strided_slice %38 {offsets = [0, 16], sizes = [16, 8], strides = [1, 1]} : vector<16x96xf32> to vector<16x8xf32>
    %44 = vector.shape_cast %43 : vector<16x8xf32> to vector<2x8x8xf32>
    %45 = vector.extract_strided_slice %38 {offsets = [0, 24], sizes = [16, 8], strides = [1, 1]} : vector<16x96xf32> to vector<16x8xf32>
    %46 = vector.shape_cast %45 : vector<16x8xf32> to vector<2x8x8xf32>
    %47 = tpu.concatenate %40, %42, %44, %46 in 0 : vector<2x8x8xf32>, vector<2x8x8xf32>, vector<2x8x8xf32>, vector<2x8x8xf32> -> vector<8x8x8xf32>
    %48 = arith.truncf %47 : vector<8x8x8xf32> to vector<8x8x8xbf16>
    %49 = vector.extract_strided_slice %38 {offsets = [0, 32], sizes = [16, 8], strides = [1, 1]} : vector<16x96xf32> to vector<16x8xf32>
    %50 = vector.shape_cast %49 : vector<16x8xf32> to vector<2x8x8xf32>
    %51 = vector.extract_strided_slice %38 {offsets = [0, 40], sizes = [16, 8], strides = [1, 1]} : vector<16x96xf32> to vector<16x8xf32>
    %52 = vector.shape_cast %51 : vector<16x8xf32> to vector<2x8x8xf32>
    %53 = vector.extract_strided_slice %38 {offsets = [0, 48], sizes = [16, 8], strides = [1, 1]} : vector<16x96xf32> to vector<16x8xf32>
    %54 = vector.shape_cast %53 : vector<16x8xf32> to vector<2x8x8xf32>
    %55 = vector.extract_strided_slice %38 {offsets = [0, 56], sizes = [16, 8], strides = [1, 1]} : vector<16x96xf32> to vector<16x8xf32>
    %56 = vector.shape_cast %55 : vector<16x8xf32> to vector<2x8x8xf32>
    %57 = tpu.concatenate %50, %52, %54, %56 in 0 : vector<2x8x8xf32>, vector<2x8x8xf32>, vector<2x8x8xf32>, vector<2x8x8xf32> -> vector<8x8x8xf32>
    %58 = arith.truncf %57 : vector<8x8x8xf32> to vector<8x8x8xbf16>
    %59 = vector.extract_strided_slice %38 {offsets = [0, 64], sizes = [16, 8], strides = [1, 1]} : vector<16x96xf32> to vector<16x8xf32>
    %60 = vector.shape_cast %59 : vector<16x8xf32> to vector<2x8x8xf32>
    %61 = vector.extract_strided_slice %38 {offsets = [0, 72], sizes = [16, 8], strides = [1, 1]} : vector<16x96xf32> to vector<16x8xf32>
    %62 = vector.shape_cast %61 : vector<16x8xf32> to vector<2x8x8xf32>
    %63 = vector.extract_strided_slice %38 {offsets = [0, 80], sizes = [16, 8], strides = [1, 1]} : vector<16x96xf32> to vector<16x8xf32>
    %64 = vector.shape_cast %63 : vector<16x8xf32> to vector<2x8x8xf32>
    %65 = vector.extract_strided_slice %38 {offsets = [0, 88], sizes = [16, 8], strides = [1, 1]} : vector<16x96xf32> to vector<16x8xf32>
    %66 = vector.shape_cast %65 : vector<16x8xf32> to vector<2x8x8xf32>
    %67 = tpu.concatenate %60, %62, %64, %66 in 0 : vector<2x8x8xf32>, vector<2x8x8xf32>, vector<2x8x8xf32>, vector<2x8x8xf32> -> vector<8x8x8xf32>
    %68 = arith.truncf %67 : vector<8x8x8xf32> to vector<8x8x8xbf16>
    "tpu.trace_start"() <{level = 10 : i32, message = "bqd,bkd->bqk"}> : () -> ()
    %cst_20 = arith.constant dense<0.000000e+00> : vector<8x8x8xf32>
    %69 = tpu.matmul %48, %58, %cst_20 {dimension_numbers = #tpu.dot_dimension_numbers<[2], [2], [1], [1], [0, 0, 0, 1, 1, 1], [0], [0]>} : vector<8x8x8xbf16>, vector<8x8x8xbf16>, vector<8x8x8xf32> -> vector<8x8x8xf32>
    "tpu.trace_stop"() : () -> ()
    %cst_21 = arith.constant dense<0xFF800000> : vector<8x8xf32>
    %70 = vector.multi_reduction <maximumf>, %69, %cst_21 [2] : vector<8x8x8xf32> to vector<8x8xf32>
    %71 = vector.shape_cast %70 : vector<8x8xf32> to vector<8x8x1xf32>
    %72 = vector.broadcast %71 : vector<8x8x1xf32> to vector<8x8x8xf32>
    %73 = arith.subf %69, %72 : vector<8x8x8xf32>
    %74 = math.exp %73 : vector<8x8x8xf32>
    %cst_22 = arith.constant dense<0.000000e+00> : vector<8x8xf32>
    %75 = vector.multi_reduction <add>, %74, %cst_22 [2] : vector<8x8x8xf32> to vector<8x8xf32>
    %76 = vector.shape_cast %75 : vector<8x8xf32> to vector<8x8x1xf32>
    %77 = tpu.reciprocal %76 {approx = true} : vector<8x8x1xf32> -> vector<8x8x1xf32>
    %78 = vector.broadcast %77 : vector<8x8x1xf32> to vector<8x8x8xf32>
    %79 = arith.mulf %74, %78 : vector<8x8x8xf32>
    %80 = arith.truncf %79 : vector<8x8x8xf32> to vector<8x8x8xbf16>
    "tpu.trace_start"() <{level = 10 : i32, message = "bqk,bkd->bqd"}> : () -> ()
    %cst_23 = arith.constant dense<0.000000e+00> : vector<8x8x8xf32>
    %81 = tpu.matmul %80, %68, %cst_23 {dimension_numbers = #tpu.dot_dimension_numbers<[2], [1], [1], [2], [0, 0, 0, 1, 1, 2], [0], [0]>} : vector<8x8x8xbf16>, vector<8x8x8xbf16>, vector<8x8x8xf32> -> vector<8x8x8xf32>
    "tpu.trace_stop"() : () -> ()
    %82 = arith.truncf %81 : vector<8x8x8xf32> to vector<8x8x8xbf16>
    %c0_24 = arith.constant 0 : index
    %c0_25 = arith.constant 0 : index
    %c0_26 = arith.constant 0 : index
    %c0_27 = arith.constant 0 : index
    %83 = vector.load %arg7[%c0_24, %c0_25, %c0_26, %c0_27] : memref<1x8x8x32xbf16, #tpu.memory_space<vmem>>, vector<1x8x8x32xbf16>
    %84 = vector.shape_cast %83 : vector<1x8x8x32xbf16> to vector<8x8x32xbf16>
    "tpu.trace_start"() <{level = 10 : i32, message = "bnd,bdo->bno"}> : () -> ()
    %cst_28 = arith.constant dense<0.000000e+00> : vector<8x8x32xf32>
    %85 = tpu.matmul %82, %84, %cst_28 {dimension_numbers = #tpu.dot_dimension_numbers<[2], [1], [1], [2], [0, 0, 0, 1, 1, 2], [0], [0]>} : vector<8x8x8xbf16>, vector<8x8x32xbf16>, vector<8x8x32xf32> -> vector<8x8x32xf32>
    "tpu.trace_stop"() : () -> ()
    %86 = vector.shape_cast %85 : vector<8x8x32xf32> to vector<4x2x8x32xf32>
    %cst_29 = arith.constant dense<0.000000e+00> : vector<2x8x32xf32>
    %87 = vector.multi_reduction <add>, %86, %cst_29 [0] : vector<4x2x8x32xf32> to vector<2x8x32xf32>
    %88 = vector.shape_cast %87 : vector<2x8x32xf32> to vector<16x32xf32>
    %89 = arith.addf %4, %88 : vector<16x32xf32>
    %c0_30 = arith.constant 0 : index
    %c0_31 = arith.constant 0 : index
    %c0_32 = arith.constant 0 : index
    %90 = vector.load %arg8[%c0_30, %c0_31, %c0_32] : memref<1x1x32xf32, #tpu.memory_space<vmem>>, vector<1x1x32xf32>
    %91 = vector.shape_cast %90 : vector<1x1x32xf32> to vector<1x32xf32>
    %92 = vector.broadcast %91 : vector<1x32xf32> to vector<16x32xf32>
    %93 = arith.addf %89, %92 : vector<16x32xf32>
    %c0_33 = arith.constant 0 : index
    %c0_34 = arith.constant 0 : index
    %c0_35 = arith.constant 0 : index
    %94 = vector.load %arg9[%c0_33, %c0_34, %c0_35] : memref<1x1x32xf32, #tpu.memory_space<vmem>>, vector<1x1x32xf32>
    %95 = vector.shape_cast %94 : vector<1x1x32xf32> to vector<1x32xf32>
    %c0_36 = arith.constant 0 : index
    %c0_37 = arith.constant 0 : index
    %c0_38 = arith.constant 0 : index
    %96 = vector.load %arg10[%c0_36, %c0_37, %c0_38] : memref<1x1x32xf32, #tpu.memory_space<vmem>>, vector<1x1x32xf32>
    %97 = vector.shape_cast %96 : vector<1x1x32xf32> to vector<1x32xf32>
    %cst_39 = arith.constant dense<0.000000e+00> : vector<16xf32>
    %98 = vector.multi_reduction <add>, %93, %cst_39 [1] : vector<16x32xf32> to vector<16xf32>
    %99 = vector.shape_cast %98 : vector<16xf32> to vector<16x1xf32>
    %cst_40 = arith.constant 3.200000e+01 : f32
    %100 = vector.broadcast %cst_40 : f32 to vector<16x1xf32>
    %101 = arith.divf %99, %100 : vector<16x1xf32>
    %102 = vector.broadcast %101 : vector<16x1xf32> to vector<16x32xf32>
    %103 = arith.subf %93, %102 : vector<16x32xf32>
    %104 = arith.mulf %103, %103 : vector<16x32xf32>
    %cst_41 = arith.constant dense<0.000000e+00> : vector<16xf32>
    %105 = vector.multi_reduction <add>, %104, %cst_41 [1] : vector<16x32xf32> to vector<16xf32>
    %106 = vector.shape_cast %105 : vector<16xf32> to vector<16x1xf32>
    %cst_42 = arith.constant 3.200000e+01 : f32
    %107 = vector.broadcast %cst_42 : f32 to vector<16x1xf32>
    %108 = arith.divf %106, %107 : vector<16x1xf32>
    %cst_43 = arith.constant 9.99999974E-6 : f32
    %109 = vector.broadcast %cst_43 : f32 to vector<16x1xf32>
    %110 = arith.addf %108, %109 : vector<16x1xf32>
    %111 = math.rsqrt %110 : vector<16x1xf32>
    %112 = vector.broadcast %101 : vector<16x1xf32> to vector<16x32xf32>
    %113 = arith.subf %93, %112 : vector<16x32xf32>
    %114 = vector.broadcast %111 : vector<16x1xf32> to vector<16x32xf32>
    %115 = arith.mulf %113, %114 : vector<16x32xf32>
    %116 = vector.broadcast %95 : vector<1x32xf32> to vector<16x32xf32>
    %117 = arith.mulf %115, %116 : vector<16x32xf32>
    %118 = vector.broadcast %97 : vector<1x32xf32> to vector<16x32xf32>
    %119 = arith.addf %117, %118 : vector<16x32xf32>
    %120 = arith.truncf %119 : vector<16x32xf32> to vector<16x32xbf16>
    %c0_44 = arith.constant 0 : index
    %c0_45 = arith.constant 0 : index
    %c0_46 = arith.constant 0 : index
    %121 = vector.load %arg11[%c0_44, %c0_45, %c0_46] : memref<1x32x64xbf16, #tpu.memory_space<vmem>>, vector<1x32x64xbf16>
    %122 = vector.shape_cast %121 : vector<1x32x64xbf16> to vector<32x64xbf16>
    %cst_47 = arith.constant dense<0.000000e+00> : vector<16x64xf32>
    %123 = tpu.matmul %120, %122, %cst_47 {dimension_numbers = #tpu.dot_dimension_numbers<[1], [0], [0], [1], [0, 0, 1, 1], [], []>} : vector<16x32xbf16>, vector<32x64xbf16>, vector<16x64xf32> -> vector<16x64xf32>
    %c0_48 = arith.constant 0 : index
    %c0_49 = arith.constant 0 : index
    %c0_50 = arith.constant 0 : index
    %124 = vector.load %arg12[%c0_48, %c0_49, %c0_50] : memref<1x1x64xf32, #tpu.memory_space<vmem>>, vector<1x1x64xf32>
    %125 = vector.shape_cast %124 : vector<1x1x64xf32> to vector<1x64xf32>
    %126 = vector.broadcast %125 : vector<1x64xf32> to vector<16x64xf32>
    %127 = arith.addf %123, %126 : vector<16x64xf32>
    %cst_51 = arith.constant 5.000000e-01 : f32
    %128 = vector.broadcast %cst_51 : f32 to vector<16x64xf32>
    %129 = arith.mulf %128, %127 : vector<16x64xf32>
    %cst_52 = arith.constant 0.707106769 : f32
    %130 = vector.broadcast %cst_52 : f32 to vector<16x64xf32>
    %131 = arith.mulf %127, %130 : vector<16x64xf32>
    %132 = math.absf %131 : vector<16x64xf32>
    %cst_53 = arith.constant 0.327591091 : f32
    %133 = vector.broadcast %cst_53 : f32 to vector<16x64xf32>
    %134 = arith.mulf %133, %132 : vector<16x64xf32>
    %cst_54 = arith.constant 1.000000e+00 : f32
    %135 = vector.broadcast %cst_54 : f32 to vector<16x64xf32>
    %136 = arith.addf %135, %134 : vector<16x64xf32>
    %cst_55 = arith.constant 1.000000e+00 : f32
    %137 = vector.broadcast %cst_55 : f32 to vector<16x64xf32>
    %138 = arith.divf %137, %136 : vector<16x64xf32>
    %cst_56 = arith.constant 1.06140542 : f32
    %139 = vector.broadcast %cst_56 : f32 to vector<16x64xf32>
    %140 = arith.mulf %138, %139 : vector<16x64xf32>
    %cst_57 = arith.constant -1.45315206 : f32
    %141 = vector.broadcast %cst_57 : f32 to vector<16x64xf32>
    %142 = arith.addf %141, %140 : vector<16x64xf32>
    %143 = arith.mulf %138, %142 : vector<16x64xf32>
    %cst_58 = arith.constant 1.42141378 : f32
    %144 = vector.broadcast %cst_58 : f32 to vector<16x64xf32>
    %145 = arith.addf %144, %143 : vector<16x64xf32>
    %146 = arith.mulf %138, %145 : vector<16x64xf32>
    %cst_59 = arith.constant -0.284496725 : f32
    %147 = vector.broadcast %cst_59 : f32 to vector<16x64xf32>
    %148 = arith.addf %147, %146 : vector<16x64xf32>
    %149 = arith.mulf %138, %148 : vector<16x64xf32>
    %cst_60 = arith.constant 0.254829586 : f32
    %150 = vector.broadcast %cst_60 : f32 to vector<16x64xf32>
    %151 = arith.addf %150, %149 : vector<16x64xf32>
    %152 = arith.mulf %138, %151 : vector<16x64xf32>
    %153 = arith.mulf %132, %132 : vector<16x64xf32>
    %cst_61 = arith.constant 0.000000e+00 : f32
    %154 = vector.broadcast %cst_61 : f32 to vector<16x64xf32>
    %155 = arith.subf %154, %153 : vector<16x64xf32>
    %156 = math.exp %155 : vector<16x64xf32>
    %157 = arith.mulf %152, %156 : vector<16x64xf32>
    %cst_62 = arith.constant 1.000000e+00 : f32
    %158 = vector.broadcast %cst_62 : f32 to vector<16x64xf32>
    %159 = arith.subf %158, %157 : vector<16x64xf32>
    %cst_63 = arith.constant 0.000000e+00 : f32
    %160 = vector.broadcast %cst_63 : f32 to vector<16x64xf32>
    %161 = arith.cmpf oge, %131, %160 : vector<16x64xf32>
    %cst_64 = arith.constant 0.000000e+00 : f32
    %162 = vector.broadcast %cst_64 : f32 to vector<16x64xf32>
    %163 = arith.subf %162, %159 : vector<16x64xf32>
    %164 = arith.select %161, %159, %163 : vector<16x64xi1>, vector<16x64xf32>
    %cst_65 = arith.constant 1.000000e+00 : f32
    %165 = vector.broadcast %cst_65 : f32 to vector<16x64xf32>
    %166 = arith.addf %165, %164 : vector<16x64xf32>
    %167 = arith.mulf %129, %166 : vector<16x64xf32>
    %168 = arith.truncf %167 : vector<16x64xf32> to vector<16x64xbf16>
    %c0_66 = arith.constant 0 : index
    %c0_67 = arith.constant 0 : index
    %c0_68 = arith.constant 0 : index
    %169 = vector.load %arg13[%c0_66, %c0_67, %c0_68] : memref<1x64x32xbf16, #tpu.memory_space<vmem>>, vector<1x64x32xbf16>
    %170 = vector.shape_cast %169 : vector<1x64x32xbf16> to vector<64x32xbf16>
    %cst_69 = arith.constant dense<0.000000e+00> : vector<16x32xf32>
    %171 = tpu.matmul %168, %170, %cst_69 {dimension_numbers = #tpu.dot_dimension_numbers<[1], [0], [0], [1], [0, 0, 1, 1], [], []>} : vector<16x64xbf16>, vector<64x32xbf16>, vector<16x32xf32> -> vector<16x32xf32>
    %c0_70 = arith.constant 0 : index
    %c0_71 = arith.constant 0 : index
    %c0_72 = arith.constant 0 : index
    %172 = vector.load %arg14[%c0_70, %c0_71, %c0_72] : memref<1x1x32xf32, #tpu.memory_space<vmem>>, vector<1x1x32xf32>
    %173 = vector.shape_cast %172 : vector<1x1x32xf32> to vector<1x32xf32>
    %174 = vector.broadcast %173 : vector<1x32xf32> to vector<16x32xf32>
    %175 = arith.addf %171, %174 : vector<16x32xf32>
    %176 = arith.addf %93, %175 : vector<16x32xf32>
    %177 = vector.shape_cast %176 : vector<16x32xf32> to vector<2x8x32xf32>
    %c0_73 = arith.constant 0 : index
    %c0_74 = arith.constant 0 : index
    %c0_75 = arith.constant 0 : index
    %178 = vector.load %arg16[%c0_73, %c0_74, %c0_75] : memref<2x8x32xf32, #tpu.memory_space<vmem>>, vector<2x8x32xf32>
    tpu.vector_store %arg16[%c0_73, %c0_74, %c0_75], %177 {strides = array<i32>} : memref<2x8x32xf32, #tpu.memory_space<vmem>>, vector<2x8x32xf32>,
    %c1_i32 = arith.constant 1 : i32
    %179 = arith.cmpi eq, %arg1, %c1_i32 : i32
    %180 = arith.extui %179 : i1 to i32
    %c0_i32_76 = arith.constant 0 : i32
    %181 = arith.cmpi ne, %180, %c0_i32_76 : i32
    scf.if %181 {
      %c0_77 = arith.constant 0 : index
      %c0_78 = arith.constant 0 : index
      %c0_79 = arith.constant 0 : index
      %182 = vector.load %arg15[%c0_77, %c0_78, %c0_79] : memref<2x8x32xf32, #tpu.memory_space<vmem>>, vector<2x8x32xf32>
      tpu.vector_store %arg15[%c0_77, %c0_78, %c0_79], %177 {strides = array<i32>} : memref<2x8x32xf32, #tpu.memory_space<vmem>>, vector<2x8x32xf32>,
    } else {
    }
    return
  }
  func.func @transform_0(%arg0: i32, %arg1: i32) -> (i32, i32, i32) {
    %c0_i32 = arith.constant 0 : i32
    %c0_i32_0 = arith.constant 0 : i32
    %c0_i32_1 = arith.constant 0 : i32
    return %arg0, %c0_i32, %c0_i32_0 : i32, i32, i32
  }
  func.func @transform_1(%arg0: i32, %arg1: i32) -> (i32, i32, i32) {
    %c0_i32 = arith.constant 0 : i32
    %c0_i32_0 = arith.constant 0 : i32
    %c0_i32_1 = arith.constant 0 : i32
    return %arg1, %c0_i32, %c0_i32_0 : i32, i32, i32
  }
  func.func @transform_2(%arg0: i32, %arg1: i32) -> (i32, i32, i32) {
    %c0_i32 = arith.constant 0 : i32
    %c0_i32_0 = arith.constant 0 : i32
    %c0_i32_1 = arith.constant 0 : i32
    return %arg1, %c0_i32, %c0_i32_0 : i32, i32, i32
  }
  func.func @transform_3(%arg0: i32, %arg1: i32) -> (i32, i32, i32) {
    %c0_i32 = arith.constant 0 : i32
    %c0_i32_0 = arith.constant 0 : i32
    %c0_i32_1 = arith.constant 0 : i32
    return %arg1, %c0_i32, %c0_i32_0 : i32, i32, i32
  }
  func.func @transform_4(%arg0: i32, %arg1: i32) -> (i32, i32, i32) {
    %c0_i32 = arith.constant 0 : i32
    %c0_i32_0 = arith.constant 0 : i32
    %c0_i32_1 = arith.constant 0 : i32
    return %arg1, %c0_i32, %c0_i32_0 : i32, i32, i32
  }
  func.func @transform_5(%arg0: i32, %arg1: i32) -> (i32, i32, i32, i32) {
    %c0_i32 = arith.constant 0 : i32
    %c0_i32_0 = arith.constant 0 : i32
    %c0_i32_1 = arith.constant 0 : i32
    %c0_i32_2 = arith.constant 0 : i32
    return %arg1, %c0_i32, %c0_i32_0, %c0_i32_1 : i32, i32, i32, i32
  }
  func.func @transform_6(%arg0: i32, %arg1: i32) -> (i32, i32, i32) {
    %c0_i32 = arith.constant 0 : i32
    %c0_i32_0 = arith.constant 0 : i32
    %c0_i32_1 = arith.constant 0 : i32
    return %arg1, %c0_i32, %c0_i32_0 : i32, i32, i32
  }
  func.func @transform_7(%arg0: i32, %arg1: i32) -> (i32, i32, i32) {
    %c0_i32 = arith.constant 0 : i32
    %c0_i32_0 = arith.constant 0 : i32
    %c0_i32_1 = arith.constant 0 : i32
    return %arg1, %c0_i32, %c0_i32_0 : i32, i32, i32
  }
  func.func @transform_8(%arg0: i32, %arg1: i32) -> (i32, i32, i32) {
    %c0_i32 = arith.constant 0 : i32
    %c0_i32_0 = arith.constant 0 : i32
    %c0_i32_1 = arith.constant 0 : i32
    return %arg1, %c0_i32, %c0_i32_0 : i32, i32, i32
  }
  func.func @transform_9(%arg0: i32, %arg1: i32) -> (i32, i32, i32) {
    %c0_i32 = arith.constant 0 : i32
    %c0_i32_0 = arith.constant 0 : i32
    %c0_i32_1 = arith.constant 0 : i32
    return %arg1, %c0_i32, %c0_i32_0 : i32, i32, i32
  }
  func.func @transform_10(%arg0: i32, %arg1: i32) -> (i32, i32, i32) {
    %c0_i32 = arith.constant 0 : i32
    %c0_i32_0 = arith.constant 0 : i32
    %c0_i32_1 = arith.constant 0 : i32
    return %arg1, %c0_i32, %c0_i32_0 : i32, i32, i32
  }
  func.func @transform_11(%arg0: i32, %arg1: i32) -> (i32, i32, i32) {
    %c0_i32 = arith.constant 0 : i32
    %c0_i32_0 = arith.constant 0 : i32
    %c0_i32_1 = arith.constant 0 : i32
    return %arg1, %c0_i32, %c0_i32_0 : i32, i32, i32
  }
  func.func @transform_12(%arg0: i32, %arg1: i32) -> (i32, i32, i32) {
    %c0_i32 = arith.constant 0 : i32
    %c0_i32_0 = arith.constant 0 : i32
    %c0_i32_1 = arith.constant 0 : i32
    return %arg1, %c0_i32, %c0_i32_0 : i32, i32, i32
  }
  func.func @transform_13(%arg0: i32, %arg1: i32) -> (i32, i32, i32) {
    %c0_i32 = arith.constant 0 : i32
    %c0_i32_0 = arith.constant 0 : i32
    %c0_i32_1 = arith.constant 0 : i32
    return %arg0, %c0_i32, %c0_i32_0 : i32, i32, i32
  }
}

</mosaic_0001>

<llo_original>
// kernel: tpu_custom_call.1
$region0: #{tpu_custom_call.1}
  #allocation0 [shape = 'u32[]', space=smem, size = 0x4, offset = 0x4, fixed_abs, tag = 'smem constant byte address 0x4 - core index']
  #allocation1 [shape = 'u32[144,128]{1,0:T(1,128)}', space=vmem, size = 0x12000, scoped, tag = 'internal scratch']
  #allocation2 [shape = 'f32[2,8,32]{2,1,0:T(8,128)}', space=vmem, size = 0x2000, scoped, tag = 'scratch operand']
  %s0 = inlined_call_operand.hbm [shape: f32[2,8,32], index: 0, kind: input, shape index: {}]
  %s1 = inlined_call_operand.vmem [shape: f32[2,1,32], index: 1, kind: input, shape index: {}]
  %s2 = inlined_call_operand.vmem [shape: f32[2,1,32], index: 2, kind: input, shape index: {}]
  %s3 = inlined_call_operand.vmem [shape: bf16[2,32,96], index: 3, kind: input, shape index: {}]
  %s4 = inlined_call_operand.vmem [shape: f32[2,1,96], index: 4, kind: input, shape index: {}]
  %s5 = inlined_call_operand.vmem [shape: bf16[2,8,8,32], index: 5, kind: input, shape index: {}]
  %s6 = inlined_call_operand.vmem [shape: f32[2,1,32], index: 6, kind: input, shape index: {}]
  %s7 = inlined_call_operand.hbm [shape: f32[2,1,32], index: 7, kind: input, shape index: {}]
  %s8 = inlined_call_operand.hbm [shape: f32[2,1,32], index: 8, kind: input, shape index: {}]
  %s9 = inlined_call_operand.hbm [shape: bf16[2,32,64], index: 9, kind: input, shape index: {}]
  %s10 = inlined_call_operand.hbm [shape: f32[2,1,64], index: 10, kind: input, shape index: {}]
  %s11 = inlined_call_operand.vmem [shape: bf16[2,64,32], index: 11, kind: input, shape index: {}]
  %s12 = inlined_call_operand.vmem [shape: f32[2,1,32], index: 12, kind: input, shape index: {}]
  %s13 = inlined_call_operand.hbm [shape: f32[2,8,32], index: 13, kind: output, shape index: {}]
  %s14 = sld [smem:[#allocation0]]
  $region113: #{tpu_custom_call.1} parent=0
    _
  %s16 = ssub.s32 1, %s14
  %s17 = scalar_select 0, %s16, %s14
  $region1: #{tpu_custom_call.1} parent=0
    #allocation3 [shape = 'u8[8192]{0}', space=vmem, size = 0x2000, scoped, tag = 'input window, operand 0, single buffered']
    #allocation4 [shape = 's32[2]{0}', space=sflag, size = 0x8, scoped, tag = 'scoped memory for tpu_custom_call.1']
    #allocation5 [shape = 's32[2]{0}', space=sflag, size = 0x8, scoped, tag = 'scoped memory for tpu_custom_call.1']
    #allocation6 [shape = 'u8[1024]{0}', space=vmem, size = 0x400, scoped, tag = 'input window, operand 7']
    #allocation7 [shape = 's32[2]{0}', space=sflag, size = 0x8, scoped, tag = 'scoped memory for tpu_custom_call.1']
    #allocation8 [shape = 'u8[1024]{0}', space=vmem, size = 0x400, scoped, tag = 'input window, operand 8']
    #allocation9 [shape = 'u8[16384]{0}', space=vmem, size = 0x4000, scoped, tag = 'input window, operand 9']
    #allocation10 [shape = 's32[2]{0}', space=sflag, size = 0x8, scoped, tag = 'scoped memory for tpu_custom_call.1']
    #allocation11 [shape = 'u8[1024]{0}', space=vmem, size = 0x400, scoped, tag = 'input window, operand 10']
    #allocation12 [shape = 'u8[8192]{0}', space=vmem, size = 0x2000, scoped, tag = 'output window, operand 0, single buffered']
    %18 = vsyncpa [#allocation4], 0
    %19 = vsyncpa [#allocation7], 0
    %s20 = scalar_lea.sflag [#allocation7], 1
    %21 = vsyncpa %s20, 0
    %22 = vsyncpa [#allocation10], 0
    %s23 = scalar_lea.sflag [#allocation10], 1
    %24 = vsyncpa %s23, 0
    %25 = vsyncpa [#allocation5], 0
    loop: start=0, step=1, limit=4
    $region2: #{tpu_custom_call.1} parent=1 // loop_pre_header
      _
    $region3: #{tpu_custom_call.1} parent=1 // loop_header
      %s27 = sphi 0, %s31
      %p28 = scmp.ge.s32.totalorder %s27, 4
      %s34 = sphi 0, %s46
      %s35 = sphi 0, %s42
      %s36 = sphi 0, %s34
      %s37 = sphi 0, %s35
      %s38 = sphi 0, %s36
      %s39 = sphi 0, %s37
      %s49 = sphi 0, %s51
      %s52 = sphi 0, %s49
      %s53 = sphi 0, %s52
      %s69 = sphi 0, %s53
      %s75 = sphi 0, %s77
      %s78 = sphi 0, %s75
      %s79 = sphi 0, %s78
      %s95 = sphi 0, %s79
      %s101 = sphi 0, %s103
      %s104 = sphi 0, %s101
      %s105 = sphi 0, %s104
      %s121 = sphi 0, %s105
      %s127 = sphi 0, %s129
      %s130 = sphi 0, %s127
      %s131 = sphi 0, %s130
      %s147 = sphi 0, %s131
      %s153 = sphi 0, %s155
      %s156 = sphi 0, %s153
      %s157 = sphi 0, %s156
      %s173 = sphi 0, %s157
      %s179 = sphi 0, %s181
      %s182 = sphi 0, %s179
      %s183 = sphi 0, %s182
      %s199 = sphi 0, %s183
      %s205 = sphi 0, %s207
      %s208 = sphi 0, %s205
      %s209 = sphi 0, %s208
      %s225 = sphi 0, %s209
      %s231 = sphi 0, %s233
      %s234 = sphi 0, %s231
      %s235 = sphi 0, %s234
      %s251 = sphi 0, %s235
      %s257 = sphi 0, %s259
      %s260 = sphi 0, %s257
      %s261 = sphi 0, %s260
      %s277 = sphi 0, %s261
      %s283 = sphi 0, %s285
      %s286 = sphi 0, %s283
      %s287 = sphi 0, %s286
      %s303 = sphi 0, %s287
      %s309 = sphi 0, %s311
      %s312 = sphi 0, %s309
      %s313 = sphi 0, %s312
      %s329 = sphi 0, %s313
      %s335 = sphi 0, %s337
      %s338 = sphi 0, %s335
      %s339 = sphi 0, %s338
      %s355 = sphi 0, %s339
      %s361 = sphi 0, %s363
      %s364 = sphi 0, %s361
      %s365 = sphi 0, %s364
      %s381 = sphi 0, %s365
      %s387 = sphi 0, %s389
      %s390 = sphi 0, %s387
      %s391 = sphi 0, %s390
      %s407 = sphi 0, %s391
    $region4: #{tpu_custom_call.1} parent=1 // loop_header_branch
      %30 = sbr.rel (%p28) target = $region8
    $region5: #{tpu_custom_call.1} parent=1 // loop_body
      %s32 = ssub.s32 %s27, 1
      %s33 = ssub.s32 %s27, 2
      %s40 = sadd.s32 1, %s35
      %p41 = scmp.ge.s32.totalorder %s40, 2
      %s42 = scalar_select %p41, 0, %s40
      %s43 = sadd.s32 1, %s34
      %s44 = scalar_select %p41, %s43, %s34
      %p45 = scmp.ge.s32.totalorder %s44, 1
      %s46 = scalar_select %p45, 0, %s44
      %s47 = ssub.s32 %s34, %s46
      %p48 = scmp.eq.s32.totalorder %s47, 0
      %s50 = sadd.s32 %s49, 1
      %s51 = scalar_select %p48, %s49, %s50
      %p54 = pneg %p48
      %p55 = scmp.eq.s32.totalorder %s27, 1
      %p56 = por %p54, %p55
      %p57 = scmp.ne.s32.totalorder %s49, %s52
      %p58 = scmp.eq.s32.totalorder %s27, 0
      %p59 = por %p57, %p58
      %p60 = scmp.ne.s32.totalorder %s49, %s52
      %p61 = scmp.eq.s32.totalorder %s32, 1
      %p62 = por %p60, %p61
      %p63 = scmp.ne.s32.totalorder %s52, %s53
      %p64 = scmp.eq.s32.totalorder %s32, 0
      %p65 = por %p63, %p64
      %p66 = scmp.ne.s32.totalorder %s52, %s53
      %p67 = scmp.eq.s32.totalorder %s33, 1
      %p68 = por %p66, %p67
      %p70 = scmp.ne.s32.totalorder %s53, %s69
      %p71 = scmp.eq.s32.totalorder %s33, 0
      %p72 = por %p70, %p71
      %s73 = ssub.s32 %s35, %s42
      %p74 = scmp.eq.s32.totalorder %s73, 0
      %s76 = sadd.s32 %s75, 1
      %s77 = scalar_select %p74, %s75, %s76
      %p80 = pneg %p74
      %p81 = scmp.eq.s32.totalorder %s27, 1
      %p82 = por %p80, %p81
      %p83 = scmp.ne.s32.totalorder %s75, %s78
      %p84 = scmp.eq.s32.totalorder %s27, 0
      %p85 = por %p83, %p84
      %p86 = scmp.ne.s32.totalorder %s75, %s78
      %p87 = scmp.eq.s32.totalorder %s32, 1
      %p88 = por %p86, %p87
      %p89 = scmp.ne.s32.totalorder %s78, %s79
      %p90 = scmp.eq.s32.totalorder %s32, 0
      %p91 = por %p89, %p90
      %p92 = scmp.ne.s32.totalorder %s78, %s79
      %p93 = scmp.eq.s32.totalorder %s33, 1
      %p94 = por %p92, %p93
      %p96 = scmp.ne.s32.totalorder %s79, %s95
      %p97 = scmp.eq.s32.totalorder %s33, 0
      %p98 = por %p96, %p97
      %s99 = ssub.s32 %s35, %s42
      %p100 = scmp.eq.s32.totalorder %s99, 0
      %s102 = sadd.s32 %s101, 1
      %s103 = scalar_select %p100, %s101, %s102
      %p106 = pneg %p100
      %p107 = scmp.eq.s32.totalorder %s27, 1
      %p108 = por %p106, %p107
      %p109 = scmp.ne.s32.totalorder %s101, %s104
      %p110 = scmp.eq.s32.totalorder %s27, 0
      %p111 = por %p109, %p110
      %p112 = scmp.ne.s32.totalorder %s101, %s104
      %p113 = scmp.eq.s32.totalorder %s32, 1
      %p114 = por %p112, %p113
      %p115 = scmp.ne.s32.totalorder %s104, %s105
      %p116 = scmp.eq.s32.totalorder %s32, 0
      %p117 = por %p115, %p116
      %p118 = scmp.ne.s32.totalorder %s104, %s105
      %p119 = scmp.eq.s32.totalorder %s33, 1
      %p120 = por %p118, %p119
      %p122 = scmp.ne.s32.totalorder %s105, %s121
      %p123 = scmp.eq.s32.totalorder %s33, 0
      %p124 = por %p122, %p123
      %s125 = ssub.s32 %s35, %s42
      %p126 = scmp.eq.s32.totalorder %s125, 0
      %s128 = sadd.s32 %s127, 1
      %s129 = scalar_select %p126, %s127, %s128
      %p132 = pneg %p126
      %p133 = scmp.eq.s32.totalorder %s27, 1
      %p134 = por %p132, %p133
      %p135 = scmp.ne.s32.totalorder %s127, %s130
      %p136 = scmp.eq.s32.totalorder %s27, 0
      %p137 = por %p135, %p136
      %p138 = scmp.ne.s32.totalorder %s127, %s130
      %p139 = scmp.eq.s32.totalorder %s32, 1
      %p140 = por %p138, %p139
      %p141 = scmp.ne.s32.totalorder %s130, %s131
      %p142 = scmp.eq.s32.totalorder %s32, 0
      %p143 = por %p141, %p142
      %p144 = scmp.ne.s32.totalorder %s130, %s131
      %p145 = scmp.eq.s32.totalorder %s33, 1
      %p146 = por %p144, %p145
      %p148 = scmp.ne.s32.totalorder %s131, %s147
      %p149 = scmp.eq.s32.totalorder %s33, 0
      %p150 = por %p148, %p149
      %s151 = ssub.s32 %s35, %s42
      %p152 = scmp.eq.s32.totalorder %s151, 0
      %s154 = sadd.s32 %s153, 1
      %s155 = scalar_select %p152, %s153, %s154
      %p158 = pneg %p152
      %p159 = scmp.eq.s32.totalorder %s27, 1
      %p160 = por %p158, %p159
      %p161 = scmp.ne.s32.totalorder %s153, %s156
      %p162 = scmp.eq.s32.totalorder %s27, 0
      %p163 = por %p161, %p162
      %p164 = scmp.ne.s32.totalorder %s153, %s156
      %p165 = scmp.eq.s32.totalorder %s32, 1
      %p166 = por %p164, %p165
      %p167 = scmp.ne.s32.totalorder %s156, %s157
      %p168 = scmp.eq.s32.totalorder %s32, 0
      %p169 = por %p167, %p168
      %p170 = scmp.ne.s32.totalorder %s156, %s157
      %p171 = scmp.eq.s32.totalorder %s33, 1
      %p172 = por %p170, %p171
      %p174 = scmp.ne.s32.totalorder %s157, %s173
      %p175 = scmp.eq.s32.totalorder %s33, 0
      %p176 = por %p174, %p175
      %s177 = ssub.s32 %s35, %s42
      %p178 = scmp.eq.s32.totalorder %s177, 0
      %s180 = sadd.s32 %s179, 1
      %s181 = scalar_select %p178, %s179, %s180
      %p184 = pneg %p178
      %p185 = scmp.eq.s32.totalorder %s27, 1
      %p186 = por %p184, %p185
      %p187 = scmp.ne.s32.totalorder %s179, %s182
      %p188 = scmp.eq.s32.totalorder %s27, 0
      %p189 = por %p187, %p188
      %p190 = scmp.ne.s32.totalorder %s179, %s182
      %p191 = scmp.eq.s32.totalorder %s32, 1
      %p192 = por %p190, %p191
      %p193 = scmp.ne.s32.totalorder %s182, %s183
      %p194 = scmp.eq.s32.totalorder %s32, 0
      %p195 = por %p193, %p194
      %p196 = scmp.ne.s32.totalorder %s182, %s183
      %p197 = scmp.eq.s32.totalorder %s33, 1
      %p198 = por %p196, %p197
      %p200 = scmp.ne.s32.totalorder %s183, %s199
      %p201 = scmp.eq.s32.totalorder %s33, 0
      %p202 = por %p200, %p201
      %s203 = ssub.s32 %s35, %s42
      %p204 = scmp.eq.s32.totalorder %s203, 0
      %s206 = sadd.s32 %s205, 1
      %s207 = scalar_select %p204, %s205, %s206
      %p210 = pneg %p204
      %p211 = scmp.eq.s32.totalorder %s27, 1
      %p212 = por %p210, %p211
      %p213 = scmp.ne.s32.totalorder %s205, %s208
      %p214 = scmp.eq.s32.totalorder %s27, 0
      %p215 = por %p213, %p214
      %p216 = scmp.ne.s32.totalorder %s205, %s208
      %p217 = scmp.eq.s32.totalorder %s32, 1
      %p218 = por %p216, %p217
      %p219 = scmp.ne.s32.totalorder %s208, %s209
      %p220 = scmp.eq.s32.totalorder %s32, 0
      %p221 = por %p219, %p220
      %p222 = scmp.ne.s32.totalorder %s208, %s209
      %p223 = scmp.eq.s32.totalorder %s33, 1
      %p224 = por %p222, %p223
      %p226 = scmp.ne.s32.totalorder %s209, %s225
      %p227 = scmp.eq.s32.totalorder %s33, 0
      %p228 = por %p226, %p227
      %s229 = ssub.s32 %s35, %s42
      %p230 = scmp.eq.s32.totalorder %s229, 0
      %s232 = sadd.s32 %s231, 1
      %s233 = scalar_select %p230, %s231, %s232
      %p236 = pneg %p230
      %p237 = scmp.eq.s32.totalorder %s27, 1
      %p238 = por %p236, %p237
      %p239 = scmp.ne.s32.totalorder %s231, %s234
      %p240 = scmp.eq.s32.totalorder %s27, 0
      %p241 = por %p239, %p240
      %p242 = scmp.ne.s32.totalorder %s231, %s234
      %p243 = scmp.eq.s32.totalorder %s32, 1
      %p244 = por %p242, %p243
      %p245 = scmp.ne.s32.totalorder %s234, %s235
      %p246 = scmp.eq.s32.totalorder %s32, 0
      %p247 = por %p245, %p246
      %p248 = scmp.ne.s32.totalorder %s234, %s235
      %p249 = scmp.eq.s32.totalorder %s33, 1
      %p250 = por %p248, %p249
      %p252 = scmp.ne.s32.totalorder %s235, %s251
      %p253 = scmp.eq.s32.totalorder %s33, 0
      %p254 = por %p252, %p253
      %s255 = ssub.s32 %s35, %s42
      %p256 = scmp.eq.s32.totalorder %s255, 0
      %s258 = sadd.s32 %s257, 1
      %s259 = scalar_select %p256, %s257, %s258
      %p262 = pneg %p256
      %p263 = scmp.eq.s32.totalorder %s27, 1
      %p264 = por %p262, %p263
      %p265 = scmp.ne.s32.totalorder %s257, %s260
      %p266 = scmp.eq.s32.totalorder %s27, 0
      %p267 = por %p265, %p266
      %p268 = scmp.ne.s32.totalorder %s257, %s260
      %p269 = scmp.eq.s32.totalorder %s32, 1
      %p270 = por %p268, %p269
      %p271 = scmp.ne.s32.totalorder %s260, %s261
      %p272 = scmp.eq.s32.totalorder %s32, 0
      %p273 = por %p271, %p272
      %p274 = scmp.ne.s32.totalorder %s260, %s261
      %p275 = scmp.eq.s32.totalorder %s33, 1
      %p276 = por %p274, %p275
      %p278 = scmp.ne.s32.totalorder %s261, %s277
      %p279 = scmp.eq.s32.totalorder %s33, 0
      %p280 = por %p278, %p279
      %s281 = ssub.s32 %s35, %s42
      %p282 = scmp.eq.s32.totalorder %s281, 0
      %s284 = sadd.s32 %s283, 1
      %s285 = scalar_select %p282, %s283, %s284
      %p288 = pneg %p282
      %p289 = scmp.eq.s32.totalorder %s27, 1
      %p290 = por %p288, %p289
      %p291 = scmp.ne.s32.totalorder %s283, %s286
      %p292 = scmp.eq.s32.totalorder %s27, 0
      %p293 = por %p291, %p292
      %p294 = scmp.ne.s32.totalorder %s283, %s286
      %p295 = scmp.eq.s32.totalorder %s32, 1
      %p296 = por %p294, %p295
      %p297 = scmp.ne.s32.totalorder %s286, %s287
      %p298 = scmp.eq.s32.totalorder %s32, 0
      %p299 = por %p297, %p298
      %p300 = scmp.ne.s32.totalorder %s286, %s287
      %p301 = scmp.eq.s32.totalorder %s33, 1
      %p302 = por %p300, %p301
      %p304 = scmp.ne.s32.totalorder %s287, %s303
      %p305 = scmp.eq.s32.totalorder %s33, 0
      %p306 = por %p304, %p305
      %s307 = ssub.s32 %s35, %s42
      %p308 = scmp.eq.s32.totalorder %s307, 0
      %s310 = sadd.s32 %s309, 1
      %s311 = scalar_select %p308, %s309, %s310
      %p314 = pneg %p308
      %p315 = scmp.eq.s32.totalorder %s27, 1
      %p316 = por %p314, %p315
      %p317 = scmp.ne.s32.totalorder %s309, %s312
      %p318 = scmp.eq.s32.totalorder %s27, 0
      %p319 = por %p317, %p318
      %p320 = scmp.ne.s32.totalorder %s309, %s312
      %p321 = scmp.eq.s32.totalorder %s32, 1
      %p322 = por %p320, %p321
      %p323 = scmp.ne.s32.totalorder %s312, %s313
      %p324 = scmp.eq.s32.totalorder %s32, 0
      %p325 = por %p323, %p324
      %p326 = scmp.ne.s32.totalorder %s312, %s313
      %p327 = scmp.eq.s32.totalorder %s33, 1
      %p328 = por %p326, %p327
      %p330 = scmp.ne.s32.totalorder %s313, %s329
      %p331 = scmp.eq.s32.totalorder %s33, 0
      %p332 = por %p330, %p331
      %s333 = ssub.s32 %s35, %s42
      %p334 = scmp.eq.s32.totalorder %s333, 0
      %s336 = sadd.s32 %s335, 1
      %s337 = scalar_select %p334, %s335, %s336
      %p340 = pneg %p334
      %p341 = scmp.eq.s32.totalorder %s27, 1
      %p342 = por %p340, %p341
      %p343 = scmp.ne.s32.totalorder %s335, %s338
      %p344 = scmp.eq.s32.totalorder %s27, 0
      %p345 = por %p343, %p344
      %p346 = scmp.ne.s32.totalorder %s335, %s338
      %p347 = scmp.eq.s32.totalorder %s32, 1
      %p348 = por %p346, %p347
      %p349 = scmp.ne.s32.totalorder %s338, %s339
      %p350 = scmp.eq.s32.totalorder %s32, 0
      %p351 = por %p349, %p350
      %p352 = scmp.ne.s32.totalorder %s338, %s339
      %p353 = scmp.eq.s32.totalorder %s33, 1
      %p354 = por %p352, %p353
      %p356 = scmp.ne.s32.totalorder %s339, %s355
      %p357 = scmp.eq.s32.totalorder %s33, 0
      %p358 = por %p356, %p357
      %s359 = ssub.s32 %s35, %s42
      %p360 = scmp.eq.s32.totalorder %s359, 0
      %s362 = sadd.s32 %s361, 1
      %s363 = scalar_select %p360, %s361, %s362
      %p366 = pneg %p360
      %p367 = scmp.eq.s32.totalorder %s27, 1
      %p368 = por %p366, %p367
      %p369 = scmp.ne.s32.totalorder %s361, %s364
      %p370 = scmp.eq.s32.totalorder %s27, 0
      %p371 = por %p369, %p370
      %p372 = scmp.ne.s32.totalorder %s361, %s364
      %p373 = scmp.eq.s32.totalorder %s32, 1
      %p374 = por %p372, %p373
      %p375 = scmp.ne.s32.totalorder %s364, %s365
      %p376 = scmp.eq.s32.totalorder %s32, 0
      %p377 = por %p375, %p376
      %p378 = scmp.ne.s32.totalorder %s364, %s365
      %p379 = scmp.eq.s32.totalorder %s33, 1
      %p380 = por %p378, %p379
      %p382 = scmp.ne.s32.totalorder %s365, %s381
      %p383 = scmp.eq.s32.totalorder %s33, 0
      %p384 = por %p382, %p383
      %s385 = ssub.s32 %s34, %s46
      %p386 = scmp.eq.s32.totalorder %s385, 0
      %s388 = sadd.s32 %s387, 1
      %s389 = scalar_select %p386, %s387, %s388
      %p392 = pneg %p386
      %p393 = scmp.eq.s32.totalorder %s27, 1
      %p394 = por %p392, %p393
      %p395 = scmp.ne.s32.totalorder %s387, %s390
      %p396 = scmp.eq.s32.totalorder %s27, 0
      %p397 = por %p395, %p396
      %p398 = scmp.ne.s32.totalorder %s387, %s390
      %p399 = scmp.eq.s32.totalorder %s32, 1
      %p400 = por %p398, %p399
      %p401 = scmp.ne.s32.totalorder %s390, %s391
      %p402 = scmp.eq.s32.totalorder %s32, 0
      %p403 = por %p401, %p402
      %p404 = scmp.ne.s32.totalorder %s390, %s391
      %p405 = scmp.eq.s32.totalorder %s33, 1
      %p406 = por %p404, %p405
      %p408 = scmp.ne.s32.totalorder %s391, %s407
      %p409 = scmp.eq.s32.totalorder %s33, 0
      %p410 = por %p408, %p409
      %p411 = scmp.le.s32.totalorder 1, %s27
      %p412 = scmp.lt.s32.totalorder %s27, 3
      %p413 = pnand %p411, %p412
      %p414 = pneg %p413
      // Predicated region
      $region9: #{tpu_custom_call.1} parent=5 // pred_check
        _
      $region10: #{tpu_custom_call.1} parent=5 // pred_check_branch
        %416 = sbr.rel (%p413) target = $region12
      $region11: #{tpu_custom_call.1} parent=5 // pred_region
        %s417 = ssub.s32 %s27, 1
        // Predicated region
        $region13: #{tpu_custom_call.1} parent=11 // pred_check
          %p418 = pneg %p65
        $region14: #{tpu_custom_call.1} parent=11 // pred_check_branch
          %420 = sbr.rel (%p418) target = $region16
        $region15: #{tpu_custom_call.1} parent=11 // pred_region
          %s421 = smul.u32 2, %s36
          %s423 = ssub.s32 256, 256
          %424 = vsyncadd [#allocation4], %s423
          %s425 = smul.addr %s421, 128
          %s426 = scalar_lea.hbm %s0, %s425
          %s427 = sshll.u32 [#allocation3], 4
          %s428 = int_to_ptr.vmem [resolvable:$true] %s427
          %433 = dma.hbm_to_vmem [thread:$0]  %s426, 256, %s428, [#allocation4], 128, 128, 8
        $region16: #{tpu_custom_call.1} parent=11 // pred_fallthru
          _
      $region12: #{tpu_custom_call.1} parent=5 // pred_fallthru
        _
      %p434 = scmp.lt.s32.totalorder %s27, 2
      // Predicated region
      $region17: #{tpu_custom_call.1} parent=5 // pred_check
        %p435 = pneg %p434
      $region18: #{tpu_custom_call.1} parent=5 // pred_check_branch
        %437 = sbr.rel (%p435) target = $region20
      $region19: #{tpu_custom_call.1} parent=5 // pred_region
        // Predicated region
        $region21: #{tpu_custom_call.1} parent=19 // pred_check
          %p438 = pneg %p85
        $region22: #{tpu_custom_call.1} parent=19 // pred_check_branch
          %440 = sbr.rel (%p438) target = $region24
        $region23: #{tpu_custom_call.1} parent=19 // pred_region
          %p441 = scmp.lt.s32.totalorder %s35, 1
          %s442 = scalar_select %p441, %s35, 1
          %s443 = scalar_lea.vmem %s1, %s442
        $region24: #{tpu_custom_call.1} parent=19 // pred_fallthru
          _
        // Predicated region
        $region25: #{tpu_custom_call.1} parent=19 // pred_check
          %p444 = pneg %p111
        $region26: #{tpu_custom_call.1} parent=19 // pred_check_branch
          %446 = sbr.rel (%p444) target = $region28
        $region27: #{tpu_custom_call.1} parent=19 // pred_region
          %p447 = scmp.lt.s32.totalorder %s35, 1
          %s448 = scalar_select %p447, %s35, 1
          %s449 = scalar_lea.vmem %s2, %s448
        $region28: #{tpu_custom_call.1} parent=19 // pred_fallthru
          _
        // Predicated region
        $region29: #{tpu_custom_call.1} parent=19 // pred_check
          %p450 = pneg %p137
        $region30: #{tpu_custom_call.1} parent=19 // pred_check_branch
          %452 = sbr.rel (%p450) target = $region32
        $region31: #{tpu_custom_call.1} parent=19 // pred_region
          %p453 = scmp.lt.s32.totalorder %s35, 1
          %s454 = scalar_select %p453, %s35, 1
          %s455 = smul.addr %s454, 4
          %s456 = smul.addr %s455, 4
          %s457 = scalar_lea.vmem %s3, %s456
        $region32: #{tpu_custom_call.1} parent=19 // pred_fallthru
          _
        // Predicated region
        $region33: #{tpu_custom_call.1} parent=19 // pred_check
          %p458 = pneg %p163
        $region34: #{tpu_custom_call.1} parent=19 // pred_check_branch
          %460 = sbr.rel (%p458) target = $region36
        $region35: #{tpu_custom_call.1} parent=19 // pred_region
          %p461 = scmp.lt.s32.totalorder %s35, 1
          %s462 = scalar_select %p461, %s35, 1
          %s463 = scalar_lea.vmem %s4, %s462
        $region36: #{tpu_custom_call.1} parent=19 // pred_fallthru
          _
        // Predicated region
        $region37: #{tpu_custom_call.1} parent=19 // pred_check
          %p464 = pneg %p189
        $region38: #{tpu_custom_call.1} parent=19 // pred_check_branch
          %466 = sbr.rel (%p464) target = $region40
        $region39: #{tpu_custom_call.1} parent=19 // pred_region
          %p467 = scmp.lt.s32.totalorder %s35, 1
          %s468 = scalar_select %p467, %s35, 1
          %s469 = smul.addr %s468, 8
          %s470 = smul.addr %s469, 4
          %s471 = scalar_lea.vmem %s5, %s470
        $region40: #{tpu_custom_call.1} parent=19 // pred_fallthru
          _
        // Predicated region
        $region41: #{tpu_custom_call.1} parent=19 // pred_check
          %p472 = pneg %p215
        $region42: #{tpu_custom_call.1} parent=19 // pred_check_branch
          %474 = sbr.rel (%p472) target = $region44
        $region43: #{tpu_custom_call.1} parent=19 // pred_region
          %p475 = scmp.lt.s32.totalorder %s35, 1
          %s476 = scalar_select %p475, %s35, 1
          %s477 = scalar_lea.vmem %s6, %s476
        $region44: #{tpu_custom_call.1} parent=19 // pred_fallthru
          _
        // Predicated region
        $region45: #{tpu_custom_call.1} parent=19 // pred_check
          %p478 = pneg %p241
        $region46: #{tpu_custom_call.1} parent=19 // pred_check_branch
          %480 = sbr.rel (%p478) target = $region48
        $region47: #{tpu_custom_call.1} parent=19 // pred_region
          %s481 = sand.u32 %s27, 1
          %s482 = scalar_lea.sflag [#allocation7], %s481
          %s483 = sand.u32 %s231, 1
          %s484 = scalar_lea.vmem [#allocation6], %s483
          %s486 = ssub.s32 16, 16
          %487 = vsyncadd %s482, %s486
          %s488 = smul.addr %s35, 16
          %s489 = scalar_lea.hbm %s7, %s488
          %s491 = sshll.u32 %s484, 4
          %s492 = int_to_ptr.vmem [resolvable:$true] %s491
          %494 = dma.hbm_to_vmem [thread:$0]  %s489, 16, %s492, %s482
        $region48: #{tpu_custom_call.1} parent=19 // pred_fallthru
          _
        // Predicated region
        $region49: #{tpu_custom_call.1} parent=19 // pred_check
          %p495 = pneg %p267
        $region50: #{tpu_custom_call.1} parent=19 // pred_check_branch
          %497 = sbr.rel (%p495) target = $region52
        $region51: #{tpu_custom_call.1} parent=19 // pred_region
          %s498 = sand.u32 %s27, 1
          %s499 = scalar_lea.sflag [#allocation7], %s498
          %s500 = sand.u32 %s257, 1
          %s501 = scalar_lea.vmem [#allocation8], %s500
          %s503 = ssub.s32 16, 16
          %504 = vsyncadd %s499, %s503
          %s505 = smul.addr %s35, 16
          %s506 = scalar_lea.hbm %s8, %s505
          %s508 = sshll.u32 %s501, 4
          %s509 = int_to_ptr.vmem [resolvable:$true] %s508
          %511 = dma.hbm_to_vmem [thread:$0]  %s506, 16, %s509, %s499
        $region52: #{tpu_custom_call.1} parent=19 // pred_fallthru
          _
        // Predicated region
        $region53: #{tpu_custom_call.1} parent=19 // pred_check
          %p512 = pneg %p293
        $region54: #{tpu_custom_call.1} parent=19 // pred_check_branch
          %514 = sbr.rel (%p512) target = $region56
        $region55: #{tpu_custom_call.1} parent=19 // pred_region
          %s515 = sand.u32 %s27, 1
          %s516 = scalar_lea.sflag [#allocation10], %s515
          %s517 = sand.u32 %s283, 1
          %s518 = smul.addr %s517, 16
          %s519 = scalar_lea.vmem [#allocation9], %s518
          %s521 = ssub.s32 256, 256
          %522 = vsyncadd %s516, %s521
          %s523 = smul.addr %s35, 4
          %s524 = smul.addr %s523, 64
          %s525 = scalar_lea.hbm %s9, %s524
          %s526 = sshll.u32 %s519, 4
          %s527 = int_to_ptr.vmem [resolvable:$true] %s526
          %532 = dma.hbm_to_vmem [thread:$0]  %s525, 256, %s527, %s516, 64, 64, 4
        $region56: #{tpu_custom_call.1} parent=19 // pred_fallthru
          _
        // Predicated region
        $region57: #{tpu_custom_call.1} parent=19 // pred_check
          %p533 = pneg %p319
        $region58: #{tpu_custom_call.1} parent=19 // pred_check_branch
          %535 = sbr.rel (%p533) target = $region60
        $region59: #{tpu_custom_call.1} parent=19 // pred_region
          %s536 = sand.u32 %s27, 1
          %s537 = scalar_lea.sflag [#allocation10], %s536
          %s538 = sand.u32 %s309, 1
          %s539 = scalar_lea.vmem [#allocation11], %s538
          %s541 = ssub.s32 16, 16
          %542 = vsyncadd %s537, %s541
          %s543 = smul.addr %s35, 16
          %s544 = scalar_lea.hbm %s10, %s543
          %s546 = sshll.u32 %s539, 4
          %s547 = int_to_ptr.vmem [resolvable:$true] %s546
          %549 = dma.hbm_to_vmem [thread:$0]  %s544, 16, %s547, %s537
        $region60: #{tpu_custom_call.1} parent=19 // pred_fallthru
          _
        // Predicated region
        $region61: #{tpu_custom_call.1} parent=19 // pred_check
          %p550 = pneg %p345
        $region62: #{tpu_custom_call.1} parent=19 // pred_check_branch
          %552 = sbr.rel (%p550) target = $region64
        $region63: #{tpu_custom_call.1} parent=19 // pred_region
          %p553 = scmp.lt.s32.totalorder %s35, 1
          %s554 = scalar_select %p553, %s35, 1
          %s555 = smul.addr %s554, 8
          %s556 = smul.addr %s555, 4
          %s557 = scalar_lea.vmem %s11, %s556
        $region64: #{tpu_custom_call.1} parent=19 // pred_fallthru
          _
        // Predicated region
        $region65: #{tpu_custom_call.1} parent=19 // pred_check
          %p558 = pneg %p371
        $region66: #{tpu_custom_call.1} parent=19 // pred_check_branch
          %560 = sbr.rel (%p558) target = $region68
        $region67: #{tpu_custom_call.1} parent=19 // pred_region
          %p561 = scmp.lt.s32.totalorder %s35, 1
          %s562 = scalar_select %p561, %s35, 1
          %s563 = scalar_lea.vmem %s12, %s562
        $region68: #{tpu_custom_call.1} parent=19 // pred_fallthru
          _
      $region20: #{tpu_custom_call.1} parent=5 // pred_fallthru
        _
      %p564 = scmp.le.s32.totalorder 1, %s27
      %p565 = scmp.lt.s32.totalorder %s27, 3
      %p566 = pnand %p564, %p565
      %p567 = pneg %p566
      // Predicated region
      $region69: #{tpu_custom_call.1} parent=5 // pred_check
        _
      $region70: #{tpu_custom_call.1} parent=5 // pred_check_branch
        %569 = sbr.rel (%p566) target = $region72
      $region71: #{tpu_custom_call.1} parent=5 // pred_region
        %s570 = ssub.s32 %s27, 1
        // Predicated region
        $region73: #{tpu_custom_call.1} parent=71 // pred_check
          %p571 = pneg %p65
        $region74: #{tpu_custom_call.1} parent=71 // pred_check_branch
          %573 = sbr.rel (%p571) target = $region76
        $region75: #{tpu_custom_call.1} parent=71 // pred_region
          %574 = dma.done [#allocation4], 256
        $region76: #{tpu_custom_call.1} parent=71 // pred_fallthru
          _
        %s575 = sand.u32 %s32, 1
        %s576 = scalar_lea.sflag [#allocation7], %s575
        %s577 = sand.u32 %s234, 1
        %s578 = scalar_lea.vmem [#allocation6], %s577
        // Predicated region
        $region77: #{tpu_custom_call.1} parent=71 // pred_check
          %p579 = pneg %p247
        $region78: #{tpu_custom_call.1} parent=71 // pred_check_branch
          %581 = sbr.rel (%p579) target = $region80
        $region79: #{tpu_custom_call.1} parent=71 // pred_region
          %582 = dma.done %s576, 16
        $region80: #{tpu_custom_call.1} parent=71 // pred_fallthru
          _
        %s583 = sand.u32 %s32, 1
        %s584 = scalar_lea.sflag [#allocation7], %s583
        %s585 = sand.u32 %s260, 1
        %s586 = scalar_lea.vmem [#allocation8], %s585
        // Predicated region
        $region81: #{tpu_custom_call.1} parent=71 // pred_check
          %p587 = pneg %p273
        $region82: #{tpu_custom_call.1} parent=71 // pred_check_branch
          %589 = sbr.rel (%p587) target = $region84
        $region83: #{tpu_custom_call.1} parent=71 // pred_region
          %590 = dma.done %s584, 16
        $region84: #{tpu_custom_call.1} parent=71 // pred_fallthru
          _
        %s591 = sand.u32 %s32, 1
        %s592 = scalar_lea.sflag [#allocation10], %s591
        %s593 = sand.u32 %s286, 1
        %s594 = smul.addr %s593, 16
        %s595 = scalar_lea.vmem [#allocation9], %s594
        // Predicated region
        $region85: #{tpu_custom_call.1} parent=71 // pred_check
          %p596 = pneg %p299
        $region86: #{tpu_custom_call.1} parent=71 // pred_check_branch
          %598 = sbr.rel (%p596) target = $region88
        $region87: #{tpu_custom_call.1} parent=71 // pred_region
          %599 = dma.done %s592, 256
        $region88: #{tpu_custom_call.1} parent=71 // pred_fallthru
          _
        %s600 = sand.u32 %s32, 1
        %s601 = scalar_lea.sflag [#allocation10], %s600
        %s602 = sand.u32 %s312, 1
        %s603 = scalar_lea.vmem [#allocation11], %s602
        // Predicated region
        $region89: #{tpu_custom_call.1} parent=71 // pred_check
          %p604 = pneg %p325
        $region90: #{tpu_custom_call.1} parent=71 // pred_check_branch
          %606 = sbr.rel (%p604) target = $region92
        $region91: #{tpu_custom_call.1} parent=71 // pred_region
          %607 = dma.done %s601, 16
        $region92: #{tpu_custom_call.1} parent=71 // pred_fallthru
          _
        %p608 = pneg %p65
        %p609 = pneg %p62
        %p610 = scmp.lt.s32.totalorder %s37, 1
        %s611 = scalar_select %p610, %s37, 1
        %s612 = scalar_lea.vmem %s1, %s611
        %p613 = pneg %p91
        %p614 = pneg %p88
        %p615 = scmp.lt.s32.totalorder %s37, 1
        %s616 = scalar_select %p615, %s37, 1
        %s617 = scalar_lea.vmem %s2, %s616
        %p618 = pneg %p117
        %p619 = pneg %p114
        %p620 = scmp.lt.s32.totalorder %s37, 1
        %s621 = scalar_select %p620, %s37, 1
        %s622 = smul.addr %s621, 4
        %s623 = smul.addr %s622, 4
        %s624 = scalar_lea.vmem %s3, %s623
        %p625 = pneg %p143
        %p626 = pneg %p140
        %p627 = scmp.lt.s32.totalorder %s37, 1
        %s628 = scalar_select %p627, %s37, 1
        %s629 = scalar_lea.vmem %s4, %s628
        %p630 = pneg %p169
        %p631 = pneg %p166
        %p632 = scmp.lt.s32.totalorder %s37, 1
        %s633 = scalar_select %p632, %s37, 1
        %s634 = smul.addr %s633, 8
        %s635 = smul.addr %s634, 4
        %s636 = scalar_lea.vmem %s5, %s635
        %p637 = pneg %p195
        %p638 = pneg %p192
        %p639 = scmp.lt.s32.totalorder %s37, 1
        %s640 = scalar_select %p639, %s37, 1
        %s641 = scalar_lea.vmem %s6, %s640
        %p642 = pneg %p221
        %p643 = pneg %p218
        %s644 = sand.u32 %s32, 1
        %s645 = scalar_lea.sflag [#allocation7], %s644
        %s646 = sand.u32 %s234, 1
        %s647 = scalar_lea.vmem [#allocation6], %s646
        %p648 = pneg %p247
        %p649 = pneg %p244
        %s650 = sand.u32 %s32, 1
        %s651 = scalar_lea.sflag [#allocation7], %s650
        %s652 = sand.u32 %s260, 1
        %s653 = scalar_lea.vmem [#allocation8], %s652
        %p654 = pneg %p273
        %p655 = pneg %p270
        %s656 = sand.u32 %s32, 1
        %s657 = scalar_lea.sflag [#allocation10], %s656
        %s658 = sand.u32 %s286, 1
        %s659 = smul.addr %s658, 16
        %s660 = scalar_lea.vmem [#allocation9], %s659
        %p661 = pneg %p299
        %p662 = pneg %p296
        %s663 = sand.u32 %s32, 1
        %s664 = scalar_lea.sflag [#allocation10], %s663
        %s665 = sand.u32 %s312, 1
        %s666 = scalar_lea.vmem [#allocation11], %s665
        %p667 = pneg %p325
        %p668 = pneg %p322
        %p669 = scmp.lt.s32.totalorder %s37, 1
        %s670 = scalar_select %p669, %s37, 1
        %s671 = smul.addr %s670, 8
        %s672 = smul.addr %s671, 4
        %s673 = scalar_lea.vmem %s11, %s672
        %p674 = pneg %p351
        %p675 = pneg %p348
        %p676 = scmp.lt.s32.totalorder %s37, 1
        %s677 = scalar_select %p676, %s37, 1
        %s678 = scalar_lea.vmem %s12, %s677
        %p679 = pneg %p377
        %p680 = pneg %p374
        %p681 = pneg %p403
        %p682 = pneg %p400
        %s683 = smul.u32 2, %s36
        %p684 = scmp.lt.s32.totalorder %s37, 1
        %s685 = scalar_select %p684, %s37, 1
        %s686 = scalar_lea.vmem %s1, %s685
        %p687 = scmp.lt.s32.totalorder %s37, 1
        %s688 = scalar_select %p687, %s37, 1
        %s689 = scalar_lea.vmem %s2, %s688
        %p690 = scmp.lt.s32.totalorder %s37, 1
        %s691 = scalar_select %p690, %s37, 1
        %s692 = smul.addr %s691, 4
        %s693 = smul.addr %s692, 4
        %s694 = scalar_lea.vmem %s3, %s693
        %p695 = scmp.lt.s32.totalorder %s37, 1
        %s696 = scalar_select %p695, %s37, 1
        %s697 = scalar_lea.vmem %s4, %s696
        %p698 = scmp.lt.s32.totalorder %s37, 1
        %s699 = scalar_select %p698, %s37, 1
        %s700 = smul.addr %s699, 8
        %s701 = smul.addr %s700, 4
        %s702 = scalar_lea.vmem %s5, %s701
        %p703 = scmp.lt.s32.totalorder %s37, 1
        %s704 = scalar_select %p703, %s37, 1
        %s705 = scalar_lea.vmem %s6, %s704
        %p706 = scmp.lt.s32.totalorder %s37, 1
        %s707 = scalar_select %p706, %s37, 1
        %s708 = smul.addr %s707, 8
        %s709 = smul.addr %s708, 4
        %s710 = scalar_lea.vmem %s11, %s709
        %p711 = scmp.lt.s32.totalorder %s37, 1
        %s712 = scalar_select %p711, %s37, 1
        %s713 = scalar_lea.vmem %s12, %s712
        %s714 = smul.u32 2, %s36
        %p716 = scmp.eq.s32.totalorder %s37, 0
        // Predicated region
        $region93: #{tpu_custom_call.1} parent=71 // pred_check
          %p717 = pneg %p716
        $region94: #{tpu_custom_call.1} parent=71 // pred_check_branch
          %719 = sbr.rel (%p717) target = $region96
        $region95: #{tpu_custom_call.1} parent=71 // pred_region
          %v720 = vld [vmem:[#allocation3] sm:$0xff]
          %v721 = vld [vmem:[#allocation3 + $0x8] sm:$0xff]
          %vm722 = vcmask 261120
          %723 = vst.msk [vmem:[#allocation2] sm:$0xff] %vm722, %v720
          %724 = vst.msk [vmem:[#allocation2 + $0x8] sm:$0xff] %vm722, %v721
        $region96: #{tpu_custom_call.1} parent=71 // pred_fallthru
          _
        %v725 = vld [vmem:[#allocation2] sm:$0xff]
        %v726 = vld [vmem:[#allocation2 + $0x8] sm:$0xff]
        %v727 = vld [vmem:[%s686] sm:$0x1]
        %v728 = vld [vmem:[%s689] sm:$0x1]
        %vm729 = vcmask 261120
        %v730 = vsel %vm729, %v725, 0.0
        %731 = vadd.xlane.f32.xlu0 %v730
        %v732 = vpop.xlane.xlu0 %731
        %v733 = vsel %vm729, %v726, 0.0
        %734 = vadd.xlane.f32.xlu0 %v733
        %v735 = vpop.xlane.xlu0 %734
        %v736 = vrcp.pop 32.0
        %v737 = vmul.f32 %v732, %v736
        %v738 = vmul.f32 %v735, %v736
        %v739 = vsub.f32 %v725, %v737
        %v740 = vsub.f32 %v726, %v738
        %v741 = vmul.f32 %v739, %v739
        %v742 = vmul.f32 %v740, %v740
        %v743 = vsel %vm729, %v741, 0.0
        %744 = vadd.xlane.f32.xlu0 %v743
        %v745 = vpop.xlane.xlu0 %744
        %v746 = vsel %vm729, %v742, 0.0
        %747 = vadd.xlane.f32.xlu0 %v746
        %v748 = vpop.xlane.xlu0 %747
        %v749 = vmul.f32 %v745, %v736
        %v750 = vmul.f32 %v748, %v736
        %v751 = vadd.f32 %v749, 1e-05
        %v752 = vadd.f32 %v750, 1e-05
        %v753 = vrsqrt.pop %v751
        %v754 = vrsqrt.pop %v752
        %v755 = vmul.f32 %v739, %v753
        %v756 = vmul.f32 %v740, %v754
        %v758 = vlaneseq
        %v759 = vshrl.u32 %v758, 7
        %v760 = vsub.s32 0, %v759
        %v761 = vrot.slane %v727, %v760
        %v763 = vmul.f32 %v755, %v761
        %v764 = vmul.f32 %v756, %v761
        %v766 = vlaneseq
        %v767 = vshrl.u32 %v766, 7
        %v768 = vsub.s32 0, %v767
        %v769 = vrot.slane %v728, %v768
        %v771 = vadd.f32 %v763, %v769
        %v772 = vadd.f32 %v764, %v769
        %v773 = vpack.c.bf16 %v772, %v771
        %v774 = vld [vmem:[%s694] sm:$0xf]
        %v775 = vld [vmem:[%s694 + $0x4] sm:$0xf]
        %v776 = vld [vmem:[%s694 + $0x8] sm:$0xf]
        %v777 = vld [vmem:[%s694 + $0xc] sm:$0xf]
        %v778 = vld [vmem:[%s697] sm:$0x1]
        %v780 = vlaneseq
        %v781 = vshrl.u32 %v780, 7
        %v782 = vsub.s32 0, %v781
        %v783 = vrot.slane %v778, %v782
        %v789 = vunpack.c.l.b16 %v774
        %v790 = vunpack.c.l.b16 %v775
        %v791 = vunpack.c.l.b16 %v776
        %v792 = vunpack.c.l.b16 %v777
        %v793 = vpack.c.b16 %v790, %v789
        %v794 = vpack.c.b16 %v792, %v791
        %v798 = vsel %vm729, %v773, 0
        %800 = vmatprep.subr.bf16.mxu0 0
        %801 = vmatpush1.bf16.msra.mxu0 %v793
        %802 = vmatprep.subr.bf16.mxu0 0
        %803 = vmatpush1.bf16.msra.mxu0 %v794
        %804 = vmatprep.subr.bf16.mxu0 0
        %805 = vmatpush1.bf16.msra.mxu0 0
        %806 = vmatprep.subr.bf16.mxu0 0
        %807 = vmatpush1.bf16.msra.mxu0 0
        %808 = vmatprep.subr.bf16.mxu0 0
        %809 = vmatpush1.bf16.msra.mxu0 0
        %810 = vmatprep.subr.bf16.mxu0 0
        %811 = vmatpush1.bf16.msra.mxu0 0
        %812 = vmatprep.subr.bf16.mxu0 0
        %813 = vmatpush1.bf16.msra.mxu0 0
        %814 = vmatprep.subr.bf16.mxu0 0
        %815 = vmatpush1.bf16.msra.mxu0 0
        %816 = vmatprep.subr.bf16.mxu0 0
        %817 = vmatpush1.bf16.msra.mxu0 0
        %818 = vmatprep.subr.bf16.mxu0 0
        %819 = vmatpush1.bf16.msra.mxu0 0
        %820 = vmatprep.subr.bf16.mxu0 0
        %821 = vmatpush1.bf16.msra.mxu0 0
        %822 = vmatprep.subr.bf16.mxu0 0
        %823 = vmatpush1.bf16.msra.mxu0 0
        %824 = vmatprep.subr.bf16.mxu0 0
        %825 = vmatpush1.bf16.msra.mxu0 0
        %826 = vmatprep.subr.bf16.mxu0 0
        %827 = vmatpush1.bf16.msra.mxu0 0
        %828 = vmatprep.subr.bf16.mxu0 0
        %829 = vmatpush1.bf16.msra.mxu0 0
        %830 = vmatprep.subr.bf16.mxu0 0
        %831 = vmatpush1.bf16.msra.mxu0 0
        %832 = vmatprep.mubr.bf16.mxu0 0
        %833 = vmatmul.mubr.bf16.gmra.mrb[0].mxu0 %v798
        %v834 = vpop.f32.mrb[0].mxu0
        %v835 = vadd.f32 %v783, %v834
        %v836 = vpop.f32.mrb[0].mxu0
        %v837 = vpop.f32.mrb[0].mxu0
        %v838 = vadd.f32 %v783, %v837
        %v839 = vpop.f32.mrb[0].mxu0
        %840 = vdwg.mxu0
        %843 = vrot.lane.b32.xlu0 %v835, 120
        %v844 = vpop.permute.xlu0 %843
        %845 = vrot.lane.b32.xlu0 %v838, 120
        %v846 = vpop.permute.xlu0 %845
        %849 = vrot.lane.b32.xlu0 %v835, 112
        %v850 = vpop.permute.xlu0 %849
        %851 = vrot.lane.b32.xlu0 %v838, 112
        %v852 = vpop.permute.xlu0 %851
        %855 = vrot.lane.b32.xlu0 %v835, 104
        %v856 = vpop.permute.xlu0 %855
        %857 = vrot.lane.b32.xlu0 %v838, 104
        %v858 = vpop.permute.xlu0 %857
        %v861 = vpack.c.bf16 %v835, %v835
        %v862 = vpack.c.bf16 %v838, %v838
        %v863 = vpack.c.bf16 %v844, %v844
        %v864 = vpack.c.bf16 %v846, %v846
        %v865 = vpack.c.bf16 %v850, %v850
        %v866 = vpack.c.bf16 %v852, %v852
        %v867 = vpack.c.bf16 %v856, %v856
        %v868 = vpack.c.bf16 %v858, %v858
        %870 = vrot.lane.b32.xlu0 %v861, 96
        %v871 = vpop.permute.xlu0 %870
        %vm872 = vcmask 64512
        %v874 = vsel %vm872, %v861, 0
        %v877 = vsel %vm872, %v871, 0
        %879 = vmatprep.subr.bf16.mxu0 0
        %880 = vmatpush1.bf16.xpose.msra.mxu0 %v877
        %881 = vmatprep.subr.bf16.mxu0 0
        %882 = vmatpush1.bf16.xpose.msra.mxu0 0
        %883 = vmatprep.subr.bf16.mxu0 0
        %884 = vmatpush1.bf16.xpose.msra.mxu0 0
        %885 = vmatprep.subr.bf16.mxu0 0
        %886 = vmatpush1.bf16.xpose.msra.mxu0 0
        %887 = vmatprep.subr.bf16.mxu0 0
        %888 = vmatpush1.bf16.xpose.msra.mxu0 0
        %889 = vmatprep.subr.bf16.mxu0 0
        %890 = vmatpush1.bf16.xpose.msra.mxu0 0
        %891 = vmatprep.subr.bf16.mxu0 0
        %892 = vmatpush1.bf16.xpose.msra.mxu0 0
        %893 = vmatprep.subr.bf16.mxu0 0
        %894 = vmatpush1.bf16.xpose.msra.mxu0 0
        %895 = vmatprep.subr.bf16.mxu0 0
        %896 = vmatpush1.bf16.xpose.msra.mxu0 0
        %897 = vmatprep.subr.bf16.mxu0 0
        %898 = vmatpush1.bf16.xpose.msra.mxu0 0
        %899 = vmatprep.subr.bf16.mxu0 0
        %900 = vmatpush1.bf16.xpose.msra.mxu0 0
        %901 = vmatprep.subr.bf16.mxu0 0
        %902 = vmatpush1.bf16.xpose.msra.mxu0 0
        %903 = vmatprep.subr.bf16.mxu0 0
        %904 = vmatpush1.bf16.xpose.msra.mxu0 0
        %905 = vmatprep.subr.bf16.mxu0 0
        %906 = vmatpush1.bf16.xpose.msra.mxu0 0
        %907 = vmatprep.subr.bf16.mxu0 0
        %908 = vmatpush1.bf16.xpose.msra.mxu0 0
        %909 = vmatprep.subr.bf16.mxu0 0
        %910 = vmatpush1.bf16.xpose.msra.mxu0 0
        %911 = vmatprep.mubr.bf16.mxu0 0
        %912 = vmatmul.mubr.bf16.gmra.mrb[0].mxu0 %v874
        %v913 = vpop.f32.mrb[0].mxu0
        %v914 = vadd.f32 0.0, %v913
        %v915 = vpop.f32.mrb[0].mxu0
        %v916 = vpop.f32.mrb[0].mxu0
        %v917 = vpop.f32.mrb[0].mxu0
        %918 = vdwg.mxu0
        %920 = vrot.lane.b32.xlu0 %v862, 96
        %v921 = vpop.permute.xlu0 %920
        %v923 = vsel %vm872, %v862, 0
        %v926 = vsel %vm872, %v921, 0
        %928 = vmatprep.subr.bf16.mxu0 0
        %929 = vmatpush1.bf16.xpose.msra.mxu0 %v926
        %930 = vmatprep.subr.bf16.mxu0 0
        %931 = vmatpush1.bf16.xpose.msra.mxu0 0
        %932 = vmatprep.subr.bf16.mxu0 0
        %933 = vmatpush1.bf16.xpose.msra.mxu0 0
        %934 = vmatprep.subr.bf16.mxu0 0
        %935 = vmatpush1.bf16.xpose.msra.mxu0 0
        %936 = vmatprep.subr.bf16.mxu0 0
        %937 = vmatpush1.bf16.xpose.msra.mxu0 0
        %938 = vmatprep.subr.bf16.mxu0 0
        %939 = vmatpush1.bf16.xpose.msra.mxu0 0
        %940 = vmatprep.subr.bf16.mxu0 0
        %941 = vmatpush1.bf16.xpose.msra.mxu0 0
        %942 = vmatprep.subr.bf16.mxu0 0
        %943 = vmatpush1.bf16.xpose.msra.mxu0 0
        %944 = vmatprep.subr.bf16.mxu0 0
        %945 = vmatpush1.bf16.xpose.msra.mxu0 0
        %946 = vmatprep.subr.bf16.mxu0 0
        %947 = vmatpush1.bf16.xpose.msra.mxu0 0
        %948 = vmatprep.subr.bf16.mxu0 0
        %949 = vmatpush1.bf16.xpose.msra.mxu0 0
        %950 = vmatprep.subr.bf16.mxu0 0
        %951 = vmatpush1.bf16.xpose.msra.mxu0 0
        %952 = vmatprep.subr.bf16.mxu0 0
        %953 = vmatpush1.bf16.xpose.msra.mxu0 0
        %954 = vmatprep.subr.bf16.mxu0 0
        %955 = vmatpush1.bf16.xpose.msra.mxu0 0
        %956 = vmatprep.subr.bf16.mxu0 0
        %957 = vmatpush1.bf16.xpose.msra.mxu0 0
        %958 = vmatprep.subr.bf16.mxu0 0
        %959 = vmatpush1.bf16.xpose.msra.mxu0 0
        %960 = vmatprep.mubr.bf16.mxu0 0
        %961 = vmatmul.mubr.bf16.gmra.mrb[0].mxu0 %v923
        %v962 = vpop.f32.mrb[0].mxu0
        %v963 = vadd.f32 0.0, %v962
        %v964 = vpop.f32.mrb[0].mxu0
        %v965 = vpop.f32.mrb[0].mxu0
        %v966 = vpop.f32.mrb[0].mxu0
        %967 = vdwg.mxu0
        %969 = vrot.lane.b32.xlu0 %v863, 96
        %v970 = vpop.permute.xlu0 %969
        %v972 = vsel %vm872, %v863, 0
        %v975 = vsel %vm872, %v970, 0
        %977 = vmatprep.subr.bf16.mxu0 0
        %978 = vmatpush1.bf16.xpose.msra.mxu0 %v975
        %979 = vmatprep.subr.bf16.mxu0 0
        %980 = vmatpush1.bf16.xpose.msra.mxu0 0
        %981 = vmatprep.subr.bf16.mxu0 0
        %982 = vmatpush1.bf16.xpose.msra.mxu0 0
        %983 = vmatprep.subr.bf16.mxu0 0
        %984 = vmatpush1.bf16.xpose.msra.mxu0 0
        %985 = vmatprep.subr.bf16.mxu0 0
        %986 = vmatpush1.bf16.xpose.msra.mxu0 0
        %987 = vmatprep.subr.bf16.mxu0 0
        %988 = vmatpush1.bf16.xpose.msra.mxu0 0
        %989 = vmatprep.subr.bf16.mxu0 0
        %990 = vmatpush1.bf16.xpose.msra.mxu0 0
        %991 = vmatprep.subr.bf16.mxu0 0
        %992 = vmatpush1.bf16.xpose.msra.mxu0 0
        %993 = vmatprep.subr.bf16.mxu0 0
        %994 = vmatpush1.bf16.xpose.msra.mxu0 0
        %995 = vmatprep.subr.bf16.mxu0 0
        %996 = vmatpush1.bf16.xpose.msra.mxu0 0
        %997 = vmatprep.subr.bf16.mxu0 0
        %998 = vmatpush1.bf16.xpose.msra.mxu0 0
        %999 = vmatprep.subr.bf16.mxu0 0
        %1000 = vmatpush1.bf16.xpose.msra.mxu0 0
        %1001 = vmatprep.subr.bf16.mxu0 0
        %1002 = vmatpush1.bf16.xpose.msra.mxu0 0
        %1003 = vmatprep.subr.bf16.mxu0 0
        %1004 = vmatpush1.bf16.xpose.msra.mxu0 0
        %1005 = vmatprep.subr.bf16.mxu0 0
        %1006 = vmatpush1.bf16.xpose.msra.mxu0 0
        %1007 = vmatprep.subr.bf16.mxu0 0
        %1008 = vmatpush1.bf16.xpose.msra.mxu0 0
        %1009 = vmatprep.mubr.bf16.mxu0 0
        %1010 = vmatmul.mubr.bf16.gmra.mrb[0].mxu0 %v972
        %v1011 = vpop.f32.mrb[0].mxu0
        %v1012 = vadd.f32 0.0, %v1011
        %v1013 = vpop.f32.mrb[0].mxu0
        %v1014 = vpop.f32.mrb[0].mxu0
        %v1015 = vpop.f32.mrb[0].mxu0
        %1016 = vdwg.mxu0
        %1018 = vrot.lane.b32.xlu0 %v864, 96
        %v1019 = vpop.permute.xlu0 %1018
        %v1021 = vsel %vm872, %v864, 0
        %v1024 = vsel %vm872, %v1019, 0
        %1026 = vmatprep.subr.bf16.mxu0 0
        %1027 = vmatpush1.bf16.xpose.msra.mxu0 %v1024
        %1028 = vmatprep.subr.bf16.mxu0 0
        %1029 = vmatpush1.bf16.xpose.msra.mxu0 0
        %1030 = vmatprep.subr.bf16.mxu0 0
        %1031 = vmatpush1.bf16.xpose.msra.mxu0 0
        %1032 = vmatprep.subr.bf16.mxu0 0
        %1033 = vmatpush1.bf16.xpose.msra.mxu0 0
        %1034 = vmatprep.subr.bf16.mxu0 0
        %1035 = vmatpush1.bf16.xpose.msra.mxu0 0
        %1036 = vmatprep.subr.bf16.mxu0 0
        %1037 = vmatpush1.bf16.xpose.msra.mxu0 0
        %1038 = vmatprep.subr.bf16.mxu0 0
        %1039 = vmatpush1.bf16.xpose.msra.mxu0 0
        %1040 = vmatprep.subr.bf16.mxu0 0
        %1041 = vmatpush1.bf16.xpose.msra.mxu0 0
        %1042 = vmatprep.subr.bf16.mxu0 0
        %1043 = vmatpush1.bf16.xpose.msra.mxu0 0
        %1044 = vmatprep.subr.bf16.mxu0 0
        %1045 = vmatpush1.bf16.xpose.msra.mxu0 0
        %1046 = vmatprep.subr.bf16.mxu0 0
        %1047 = vmatpush1.bf16.xpose.msra.mxu0 0
        %1048 = vmatprep.subr.bf16.mxu0 0
        %1049 = vmatpush1.bf16.xpose.msra.mxu0 0
        %1050 = vmatprep.subr.bf16.mxu0 0
        %1051 = vmatpush1.bf16.xpose.msra.mxu0 0
        %1052 = vmatprep.subr.bf16.mxu0 0
        %1053 = vmatpush1.bf16.xpose.msra.mxu0 0
        %1054 = vmatprep.subr.bf16.mxu0 0
        %1055 = vmatpush1.bf16.xpose.msra.mxu0 0
        %1056 = vmatprep.subr.bf16.mxu0 0
        %1057 = vmatpush1.bf16.xpose.msra.mxu0 0
        %1058 = vmatprep.mubr.bf16.mxu0 0
        %1059 = vmatmul.mubr.bf16.gmra.mrb[0].mxu0 %v1021
        %v1060 = vpop.f32.mrb[0].mxu0
        %v1061 = vadd.f32 0.0, %v1060
        %v1062 = vpop.f32.mrb[0].mxu0
        %v1063 = vpop.f32.mrb[0].mxu0
        %v1064 = vpop.f32.mrb[0].mxu0
        %1065 = vdwg.mxu0
        %1067 = vrot.lane.b32.xlu0 %v865, 96
        %v1068 = vpop.permute.xlu0 %1067
        %v1070 = vsel %vm872, %v865, 0
        %v1073 = vsel %vm872, %v1068, 0
        %1075 = vmatprep.subr.bf16.mxu0 0
        %1076 = vmatpush1.bf16.xpose.msra.mxu0 %v1073
        %1077 = vmatprep.subr.bf16.mxu0 0
        %1078 = vmatpush1.bf16.xpose.msra.mxu0 0
        %1079 = vmatprep.subr.bf16.mxu0 0
        %1080 = vmatpush1.bf16.xpose.msra.mxu0 0
        %1081 = vmatprep.subr.bf16.mxu0 0
        %1082 = vmatpush1.bf16.xpose.msra.mxu0 0
        %1083 = vmatprep.subr.bf16.mxu0 0
        %1084 = vmatpush1.bf16.xpose.msra.mxu0 0
        %1085 = vmatprep.subr.bf16.mxu0 0
        %1086 = vmatpush1.bf16.xpose.msra.mxu0 0
        %1087 = vmatprep.subr.bf16.mxu0 0
        %1088 = vmatpush1.bf16.xpose.msra.mxu0 0
        %1089 = vmatprep.subr.bf16.mxu0 0
        %1090 = vmatpush1.bf16.xpose.msra.mxu0 0
        %1091 = vmatprep.subr.bf16.mxu0 0
        %1092 = vmatpush1.bf16.xpose.msra.mxu0 0
        %1093 = vmatprep.subr.bf16.mxu0 0
        %1094 = vmatpush1.bf16.xpose.msra.mxu0 0
        %1095 = vmatprep.subr.bf16.mxu0 0
        %1096 = vmatpush1.bf16.xpose.msra.mxu0 0
        %1097 = vmatprep.subr.bf16.mxu0 0
        %1098 = vmatpush1.bf16.xpose.msra.mxu0 0
        %1099 = vmatprep.subr.bf16.mxu0 0
        %1100 = vmatpush1.bf16.xpose.msra.mxu0 0
        %1101 = vmatprep.subr.bf16.mxu0 0
        %1102 = vmatpush1.bf16.xpose.msra.mxu0 0
        %1103 = vmatprep.subr.bf16.mxu0 0
        %1104 = vmatpush1.bf16.xpose.msra.mxu0 0
        %1105 = vmatprep.subr.bf16.mxu0 0
        %1106 = vmatpush1.bf16.xpose.msra.mxu0 0
        %1107 = vmatprep.mubr.bf16.mxu0 0
        %1108 = vmatmul.mubr.bf16.gmra.mrb[0].mxu0 %v1070
        %v1109 = vpop.f32.mrb[0].mxu0
        %v1110 = vadd.f32 0.0, %v1109
        %v1111 = vpop.f32.mrb[0].mxu0
        %v1112 = vpop.f32.mrb[0].mxu0
        %v1113 = vpop.f32.mrb[0].mxu0
        %1114 = vdwg.mxu0
        %1116 = vrot.lane.b32.xlu0 %v866, 96
        %v1117 = vpop.permute.xlu0 %1116
        %v1119 = vsel %vm872, %v866, 0
        %v1122 = vsel %vm872, %v1117, 0
        %1124 = vmatprep.subr.bf16.mxu0 0
        %1125 = vmatpush1.bf16.xpose.msra.mxu0 %v1122
        %1126 = vmatprep.subr.bf16.mxu0 0
        %1127 = vmatpush1.bf16.xpose.msra.mxu0 0
        %1128 = vmatprep.subr.bf16.mxu0 0
        %1129 = vmatpush1.bf16.xpose.msra.mxu0 0
        %1130 = vmatprep.subr.bf16.mxu0 0
        %1131 = vmatpush1.bf16.xpose.msra.mxu0 0
        %1132 = vmatprep.subr.bf16.mxu0 0
        %1133 = vmatpush1.bf16.xpose.msra.mxu0 0
        %1134 = vmatprep.subr.bf16.mxu0 0
        %1135 = vmatpush1.bf16.xpose.msra.mxu0 0
        %1136 = vmatprep.subr.bf16.mxu0 0
        %1137 = vmatpush1.bf16.xpose.msra.mxu0 0
        %1138 = vmatprep.subr.bf16.mxu0 0
        %1139 = vmatpush1.bf16.xpose.msra.mxu0 0
        %1140 = vmatprep.subr.bf16.mxu0 0
        %1141 = vmatpush1.bf16.xpose.msra.mxu0 0
        %1142 = vmatprep.subr.bf16.mxu0 0
        %1143 = vmatpush1.bf16.xpose.msra.mxu0 0
        %1144 = vmatprep.subr.bf16.mxu0 0
        %1145 = vmatpush1.bf16.xpose.msra.mxu0 0
        %1146 = vmatprep.subr.bf16.mxu0 0
        %1147 = vmatpush1.bf16.xpose.msra.mxu0 0
        %1148 = vmatprep.subr.bf16.mxu0 0
        %1149 = vmatpush1.bf16.xpose.msra.mxu0 0
        %1150 = vmatprep.subr.bf16.mxu0 0
        %1151 = vmatpush1.bf16.xpose.msra.mxu0 0
        %1152 = vmatprep.subr.bf16.mxu0 0
        %1153 = vmatpush1.bf16.xpose.msra.mxu0 0
        %1154 = vmatprep.subr.bf16.mxu0 0
        %1155 = vmatpush1.bf16.xpose.msra.mxu0 0
        %1156 = vmatprep.mubr.bf16.mxu0 0
        %1157 = vmatmul.mubr.bf16.gmra.mrb[0].mxu0 %v1119
        %v1158 = vpop.f32.mrb[0].mxu0
        %v1159 = vadd.f32 0.0, %v1158
        %v1160 = vpop.f32.mrb[0].mxu0
        %v1161 = vpop.f32.mrb[0].mxu0
        %v1162 = vpop.f32.mrb[0].mxu0
        %1163 = vdwg.mxu0
        %1165 = vrot.lane.b32.xlu0 %v867, 96
        %v1166 = vpop.permute.xlu0 %1165
        %v1168 = vsel %vm872, %v867, 0
        %v1171 = vsel %vm872, %v1166, 0
        %1173 = vmatprep.subr.bf16.mxu0 0
        %1174 = vmatpush1.bf16.xpose.msra.mxu0 %v1171
        %1175 = vmatprep.subr.bf16.mxu0 0
        %1176 = vmatpush1.bf16.xpose.msra.mxu0 0
        %1177 = vmatprep.subr.bf16.mxu0 0
        %1178 = vmatpush1.bf16.xpose.msra.mxu0 0
        %1179 = vmatprep.subr.bf16.mxu0 0
        %1180 = vmatpush1.bf16.xpose.msra.mxu0 0
        %1181 = vmatprep.subr.bf16.mxu0 0
        %1182 = vmatpush1.bf16.xpose.msra.mxu0 0
        %1183 = vmatprep.subr.bf16.mxu0 0
        %1184 = vmatpush1.bf16.xpose.msra.mxu0 0
        %1185 = vmatprep.subr.bf16.mxu0 0
        %1186 = vmatpush1.bf16.xpose.msra.mxu0 0
        %1187 = vmatprep.subr.bf16.mxu0 0
        %1188 = vmatpush1.bf16.xpose.msra.mxu0 0
        %1189 = vmatprep.subr.bf16.mxu0 0
        %1190 = vmatpush1.bf16.xpose.msra.mxu0 0
        %1191 = vmatprep.subr.bf16.mxu0 0
        %1192 = vmatpush1.bf16.xpose.msra.mxu0 0
        %1193 = vmatprep.subr.bf16.mxu0 0
        %1194 = vmatpush1.bf16.xpose.msra.mxu0 0
        %1195 = vmatprep.subr.bf16.mxu0 0
        %1196 = vmatpush1.bf16.xpose.msra.mxu0 0
        %1197 = vmatprep.subr.bf16.mxu0 0
        %1198 = vmatpush1.bf16.xpose.msra.mxu0 0
        %1199 = vmatprep.subr.bf16.mxu0 0
        %1200 = vmatpush1.bf16.xpose.msra.mxu0 0
        %1201 = vmatprep.subr.bf16.mxu0 0
        %1202 = vmatpush1.bf16.xpose.msra.mxu0 0
        %1203 = vmatprep.subr.bf16.mxu0 0
        %1204 = vmatpush1.bf16.xpose.msra.mxu0 0
        %1205 = vmatprep.mubr.bf16.mxu0 0
        %1206 = vmatmul.mubr.bf16.gmra.mrb[0].mxu0 %v1168
        %v1207 = vpop.f32.mrb[0].mxu0
        %v1208 = vadd.f32 0.0, %v1207
        %v1209 = vpop.f32.mrb[0].mxu0
        %v1210 = vpop.f32.mrb[0].mxu0
        %v1211 = vpop.f32.mrb[0].mxu0
        %1212 = vdwg.mxu0
        %1214 = vrot.lane.b32.xlu0 %v868, 96
        %v1215 = vpop.permute.xlu0 %1214
        %v1217 = vsel %vm872, %v868, 0
        %v1220 = vsel %vm872, %v1215, 0
        %1222 = vmatprep.subr.bf16.mxu0 0
        %1223 = vmatpush1.bf16.xpose.msra.mxu0 %v1220
        %1224 = vmatprep.subr.bf16.mxu0 0
        %1225 = vmatpush1.bf16.xpose.msra.mxu0 0
        %1226 = vmatprep.subr.bf16.mxu0 0
        %1227 = vmatpush1.bf16.xpose.msra.mxu0 0
        %1228 = vmatprep.subr.bf16.mxu0 0
        %1229 = vmatpush1.bf16.xpose.msra.mxu0 0
        %1230 = vmatprep.subr.bf16.mxu0 0
        %1231 = vmatpush1.bf16.xpose.msra.mxu0 0
        %1232 = vmatprep.subr.bf16.mxu0 0
        %1233 = vmatpush1.bf16.xpose.msra.mxu0 0
        %1234 = vmatprep.subr.bf16.mxu0 0
        %1235 = vmatpush1.bf16.xpose.msra.mxu0 0
        %1236 = vmatprep.subr.bf16.mxu0 0
        %1237 = vmatpush1.bf16.xpose.msra.mxu0 0
        %1238 = vmatprep.subr.bf16.mxu0 0
        %1239 = vmatpush1.bf16.xpose.msra.mxu0 0
        %1240 = vmatprep.subr.bf16.mxu0 0
        %1241 = vmatpush1.bf16.xpose.msra.mxu0 0
        %1242 = vmatprep.subr.bf16.mxu0 0
        %1243 = vmatpush1.bf16.xpose.msra.mxu0 0
        %1244 = vmatprep.subr.bf16.mxu0 0
        %1245 = vmatpush1.bf16.xpose.msra.mxu0 0
        %1246 = vmatprep.subr.bf16.mxu0 0
        %1247 = vmatpush1.bf16.xpose.msra.mxu0 0
        %1248 = vmatprep.subr.bf16.mxu0 0
        %1249 = vmatpush1.bf16.xpose.msra.mxu0 0
        %1250 = vmatprep.subr.bf16.mxu0 0
        %1251 = vmatpush1.bf16.xpose.msra.mxu0 0
        %1252 = vmatprep.subr.bf16.mxu0 0
        %1253 = vmatpush1.bf16.xpose.msra.mxu0 0
        %1254 = vmatprep.mubr.bf16.mxu0 0
        %1255 = vmatmul.mubr.bf16.gmra.mrb[0].mxu0 %v1217
        %v1256 = vpop.f32.mrb[0].mxu0
        %v1257 = vadd.f32 0.0, %v1256
        %v1258 = vpop.f32.mrb[0].mxu0
        %v1259 = vpop.f32.mrb[0].mxu0
        %v1260 = vpop.f32.mrb[0].mxu0
        %1261 = vdwg.mxu0
        %v1262 = vsel %vm872, %v914, -inf
        %1263 = vmax.xlane.f32.xlu0 %v1262
        %v1264 = vpop.xlane.xlu0 %1263
        %v1265 = vsel %vm872, %v963, -inf
        %1266 = vmax.xlane.f32.xlu0 %v1265
        %v1267 = vpop.xlane.xlu0 %1266
        %v1268 = vsel %vm872, %v1012, -inf
        %1269 = vmax.xlane.f32.xlu0 %v1268
        %v1270 = vpop.xlane.xlu0 %1269
        %v1271 = vsel %vm872, %v1061, -inf
        %1272 = vmax.xlane.f32.xlu0 %v1271
        %v1273 = vpop.xlane.xlu0 %1272
        %v1274 = vsel %vm872, %v1110, -inf
        %1275 = vmax.xlane.f32.xlu0 %v1274
        %v1276 = vpop.xlane.xlu0 %1275
        %v1277 = vsel %vm872, %v1159, -inf
        %1278 = vmax.xlane.f32.xlu0 %v1277
        %v1279 = vpop.xlane.xlu0 %1278
        %v1280 = vsel %vm872, %v1208, -inf
        %1281 = vmax.xlane.f32.xlu0 %v1280
        %v1282 = vpop.xlane.xlu0 %1281
        %v1283 = vsel %vm872, %v1257, -inf
        %1284 = vmax.xlane.f32.xlu0 %v1283
        %v1285 = vpop.xlane.xlu0 %1284
        %v1286 = vsub.f32 %v914, %v1264
        %v1287 = vsub.f32 %v963, %v1267
        %v1288 = vsub.f32 %v1012, %v1270
        %v1289 = vsub.f32 %v1061, %v1273
        %v1290 = vsub.f32 %v1110, %v1276
        %v1291 = vsub.f32 %v1159, %v1279
        %v1292 = vsub.f32 %v1208, %v1282
        %v1293 = vsub.f32 %v1257, %v1285
        %v1294 = vmul.f32 %v1286, 1.442695
        %v1295 = vpow.pop %v1294
        %v1296 = vmul.f32 %v1287, 1.442695
        %v1297 = vpow.pop %v1296
        %v1298 = vmul.f32 %v1288, 1.442695
        %v1299 = vpow.pop %v1298
        %v1300 = vmul.f32 %v1289, 1.442695
        %v1301 = vpow.pop %v1300
        %v1302 = vmul.f32 %v1290, 1.442695
        %v1303 = vpow.pop %v1302
        %v1304 = vmul.f32 %v1291, 1.442695
        %v1305 = vpow.pop %v1304
        %v1306 = vmul.f32 %v1292, 1.442695
        %v1307 = vpow.pop %v1306
        %v1308 = vmul.f32 %v1293, 1.442695
        %v1309 = vpow.pop %v1308
        %v1310 = vsel %vm872, %v1295, 0.0
        %1311 = vadd.xlane.f32.xlu0 %v1310
        %v1312 = vpop.xlane.xlu0 %1311
        %v1313 = vsel %vm872, %v1297, 0.0
        %1314 = vadd.xlane.f32.xlu0 %v1313
        %v1315 = vpop.xlane.xlu0 %1314
        %v1316 = vsel %vm872, %v1299, 0.0
        %1317 = vadd.xlane.f32.xlu0 %v1316
        %v1318 = vpop.xlane.xlu0 %1317
        %v1319 = vsel %vm872, %v1301, 0.0
        %1320 = vadd.xlane.f32.xlu0 %v1319
        %v1321 = vpop.xlane.xlu0 %1320
        %v1322 = vsel %vm872, %v1303, 0.0
        %1323 = vadd.xlane.f32.xlu0 %v1322
        %v1324 = vpop.xlane.xlu0 %1323
        %v1325 = vsel %vm872, %v1305, 0.0
        %1326 = vadd.xlane.f32.xlu0 %v1325
        %v1327 = vpop.xlane.xlu0 %1326
        %v1328 = vsel %vm872, %v1307, 0.0
        %1329 = vadd.xlane.f32.xlu0 %v1328
        %v1330 = vpop.xlane.xlu0 %1329
        %v1331 = vsel %vm872, %v1309, 0.0
        %1332 = vadd.xlane.f32.xlu0 %v1331
        %v1333 = vpop.xlane.xlu0 %1332
        %v1334 = vrcp.pop %v1312
        %v1335 = vrcp.pop %v1315
        %v1336 = vrcp.pop %v1318
        %v1337 = vrcp.pop %v1321
        %v1338 = vrcp.pop %v1324
        %v1339 = vrcp.pop %v1327
        %v1340 = vrcp.pop %v1330
        %v1341 = vrcp.pop %v1333
        %v1342 = vmul.f32 %v1295, %v1334
        %v1343 = vmul.f32 %v1297, %v1335
        %v1344 = vmul.f32 %v1299, %v1336
        %v1345 = vmul.f32 %v1301, %v1337
        %v1346 = vmul.f32 %v1303, %v1338
        %v1347 = vmul.f32 %v1305, %v1339
        %v1348 = vmul.f32 %v1307, %v1340
        %v1349 = vmul.f32 %v1309, %v1341
        %v1350 = vpack.c.bf16 %v1342, %v1342
        %v1351 = vpack.c.bf16 %v1343, %v1343
        %v1352 = vpack.c.bf16 %v1344, %v1344
        %v1353 = vpack.c.bf16 %v1345, %v1345
        %v1354 = vpack.c.bf16 %v1346, %v1346
        %v1355 = vpack.c.bf16 %v1347, %v1347
        %v1356 = vpack.c.bf16 %v1348, %v1348
        %v1357 = vpack.c.bf16 %v1349, %v1349
        %1358 = vrot.lane.b32.xlu0 %v861, 64
        %v1359 = vpop.permute.xlu0 %1358
        %v1361 = vsel %vm872, %v1350, 0
        %vm1363 = vcmask 1043456
        %v1365 = vsel %vm1363, %v1359, 0
        %1367 = vmatprep.subr.bf16.mxu0 0
        %1368 = vmatpush1.bf16.msra.mxu0 %v1365
        %1369 = vmatprep.subr.bf16.mxu0 0
        %1370 = vmatpush1.bf16.msra.mxu0 0
        %1371 = vmatprep.subr.bf16.mxu0 0
        %1372 = vmatpush1.bf16.msra.mxu0 0
        %1373 = vmatprep.subr.bf16.mxu0 0
        %1374 = vmatpush1.bf16.msra.mxu0 0
        %1375 = vmatprep.subr.bf16.mxu0 0
        %1376 = vmatpush1.bf16.msra.mxu0 0
        %1377 = vmatprep.subr.bf16.mxu0 0
        %1378 = vmatpush1.bf16.msra.mxu0 0
        %1379 = vmatprep.subr.bf16.mxu0 0
        %1380 = vmatpush1.bf16.msra.mxu0 0
        %1381 = vmatprep.subr.bf16.mxu0 0
        %1382 = vmatpush1.bf16.msra.mxu0 0
        %1383 = vmatprep.subr.bf16.mxu0 0
        %1384 = vmatpush1.bf16.msra.mxu0 0
        %1385 = vmatprep.subr.bf16.mxu0 0
        %1386 = vmatpush1.bf16.msra.mxu0 0
        %1387 = vmatprep.subr.bf16.mxu0 0
        %1388 = vmatpush1.bf16.msra.mxu0 0
        %1389 = vmatprep.subr.bf16.mxu0 0
        %1390 = vmatpush1.bf16.msra.mxu0 0
        %1391 = vmatprep.subr.bf16.mxu0 0
        %1392 = vmatpush1.bf16.msra.mxu0 0
        %1393 = vmatprep.subr.bf16.mxu0 0
        %1394 = vmatpush1.bf16.msra.mxu0 0
        %1395 = vmatprep.subr.bf16.mxu0 0
        %1396 = vmatpush1.bf16.msra.mxu0 0
        %1397 = vmatprep.subr.bf16.mxu0 0
        %1398 = vmatpush1.bf16.msra.mxu0 0
        %1399 = vmatprep.mubr.bf16.mxu0 0
        %1400 = vmatmul.mubr.bf16.gmra.mrb[0].mxu0 %v1361
        %v1401 = vpop.f32.mrb[0].mxu0
        %v1402 = vadd.f32 0.0, %v1401
        %v1403 = vpop.f32.mrb[0].mxu0
        %v1404 = vpop.f32.mrb[0].mxu0
        %v1405 = vpop.f32.mrb[0].mxu0
        %1406 = vdwg.mxu0
        %1407 = vrot.lane.b32.xlu0 %v862, 64
        %v1408 = vpop.permute.xlu0 %1407
        %v1410 = vsel %vm872, %v1351, 0
        %v1413 = vsel %vm1363, %v1408, 0
        %1415 = vmatprep.subr.bf16.mxu0 0
        %1416 = vmatpush1.bf16.msra.mxu0 %v1413
        %1417 = vmatprep.subr.bf16.mxu0 0
        %1418 = vmatpush1.bf16.msra.mxu0 0
        %1419 = vmatprep.subr.bf16.mxu0 0
        %1420 = vmatpush1.bf16.msra.mxu0 0
        %1421 = vmatprep.subr.bf16.mxu0 0
        %1422 = vmatpush1.bf16.msra.mxu0 0
        %1423 = vmatprep.subr.bf16.mxu0 0
        %1424 = vmatpush1.bf16.msra.mxu0 0
        %1425 = vmatprep.subr.bf16.mxu0 0
        %1426 = vmatpush1.bf16.msra.mxu0 0
        %1427 = vmatprep.subr.bf16.mxu0 0
        %1428 = vmatpush1.bf16.msra.mxu0 0
        %1429 = vmatprep.subr.bf16.mxu0 0
        %1430 = vmatpush1.bf16.msra.mxu0 0
        %1431 = vmatprep.subr.bf16.mxu0 0
        %1432 = vmatpush1.bf16.msra.mxu0 0
        %1433 = vmatprep.subr.bf16.mxu0 0
        %1434 = vmatpush1.bf16.msra.mxu0 0
        %1435 = vmatprep.subr.bf16.mxu0 0
        %1436 = vmatpush1.bf16.msra.mxu0 0
        %1437 = vmatprep.subr.bf16.mxu0 0
        %1438 = vmatpush1.bf16.msra.mxu0 0
        %1439 = vmatprep.subr.bf16.mxu0 0
        %1440 = vmatpush1.bf16.msra.mxu0 0
        %1441 = vmatprep.subr.bf16.mxu0 0
        %1442 = vmatpush1.bf16.msra.mxu0 0
        %1443 = vmatprep.subr.bf16.mxu0 0
        %1444 = vmatpush1.bf16.msra.mxu0 0
        %1445 = vmatprep.subr.bf16.mxu0 0
        %1446 = vmatpush1.bf16.msra.mxu0 0
        %1447 = vmatprep.mubr.bf16.mxu0 0
        %1448 = vmatmul.mubr.bf16.gmra.mrb[0].mxu0 %v1410
        %v1449 = vpop.f32.mrb[0].mxu0
        %v1450 = vadd.f32 0.0, %v1449
        %v1451 = vpop.f32.mrb[0].mxu0
        %v1452 = vpop.f32.mrb[0].mxu0
        %v1453 = vpop.f32.mrb[0].mxu0
        %1454 = vdwg.mxu0
        %1455 = vrot.lane.b32.xlu0 %v863, 64
        %v1456 = vpop.permute.xlu0 %1455
        %v1458 = vsel %vm872, %v1352, 0
        %v1461 = vsel %vm1363, %v1456, 0
        %1463 = vmatprep.subr.bf16.mxu0 0
        %1464 = vmatpush1.bf16.msra.mxu0 %v1461
        %1465 = vmatprep.subr.bf16.mxu0 0
        %1466 = vmatpush1.bf16.msra.mxu0 0
        %1467 = vmatprep.subr.bf16.mxu0 0
        %1468 = vmatpush1.bf16.msra.mxu0 0
        %1469 = vmatprep.subr.bf16.mxu0 0
        %1470 = vmatpush1.bf16.msra.mxu0 0
        %1471 = vmatprep.subr.bf16.mxu0 0
        %1472 = vmatpush1.bf16.msra.mxu0 0
        %1473 = vmatprep.subr.bf16.mxu0 0
        %1474 = vmatpush1.bf16.msra.mxu0 0
        %1475 = vmatprep.subr.bf16.mxu0 0
        %1476 = vmatpush1.bf16.msra.mxu0 0
        %1477 = vmatprep.subr.bf16.mxu0 0
        %1478 = vmatpush1.bf16.msra.mxu0 0
        %1479 = vmatprep.subr.bf16.mxu0 0
        %1480 = vmatpush1.bf16.msra.mxu0 0
        %1481 = vmatprep.subr.bf16.mxu0 0
        %1482 = vmatpush1.bf16.msra.mxu0 0
        %1483 = vmatprep.subr.bf16.mxu0 0
        %1484 = vmatpush1.bf16.msra.mxu0 0
        %1485 = vmatprep.subr.bf16.mxu0 0
        %1486 = vmatpush1.bf16.msra.mxu0 0
        %1487 = vmatprep.subr.bf16.mxu0 0
        %1488 = vmatpush1.bf16.msra.mxu0 0
        %1489 = vmatprep.subr.bf16.mxu0 0
        %1490 = vmatpush1.bf16.msra.mxu0 0
        %1491 = vmatprep.subr.bf16.mxu0 0
        %1492 = vmatpush1.bf16.msra.mxu0 0
        %1493 = vmatprep.subr.bf16.mxu0 0
        %1494 = vmatpush1.bf16.msra.mxu0 0
        %1495 = vmatprep.mubr.bf16.mxu0 0
        %1496 = vmatmul.mubr.bf16.gmra.mrb[0].mxu0 %v1458
        %v1497 = vpop.f32.mrb[0].mxu0
        %v1498 = vadd.f32 0.0, %v1497
        %v1499 = vpop.f32.mrb[0].mxu0
        %v1500 = vpop.f32.mrb[0].mxu0
        %v1501 = vpop.f32.mrb[0].mxu0
        %1502 = vdwg.mxu0
        %1503 = vrot.lane.b32.xlu0 %v864, 64
        %v1504 = vpop.permute.xlu0 %1503
        %v1506 = vsel %vm872, %v1353, 0
        %v1509 = vsel %vm1363, %v1504, 0
        %1511 = vmatprep.subr.bf16.mxu0 0
        %1512 = vmatpush1.bf16.msra.mxu0 %v1509
        %1513 = vmatprep.subr.bf16.mxu0 0
        %1514 = vmatpush1.bf16.msra.mxu0 0
        %1515 = vmatprep.subr.bf16.mxu0 0
        %1516 = vmatpush1.bf16.msra.mxu0 0
        %1517 = vmatprep.subr.bf16.mxu0 0
        %1518 = vmatpush1.bf16.msra.mxu0 0
        %1519 = vmatprep.subr.bf16.mxu0 0
        %1520 = vmatpush1.bf16.msra.mxu0 0
        %1521 = vmatprep.subr.bf16.mxu0 0
        %1522 = vmatpush1.bf16.msra.mxu0 0
        %1523 = vmatprep.subr.bf16.mxu0 0
        %1524 = vmatpush1.bf16.msra.mxu0 0
        %1525 = vmatprep.subr.bf16.mxu0 0
        %1526 = vmatpush1.bf16.msra.mxu0 0
        %1527 = vmatprep.subr.bf16.mxu0 0
        %1528 = vmatpush1.bf16.msra.mxu0 0
        %1529 = vmatprep.subr.bf16.mxu0 0
        %1530 = vmatpush1.bf16.msra.mxu0 0
        %1531 = vmatprep.subr.bf16.mxu0 0
        %1532 = vmatpush1.bf16.msra.mxu0 0
        %1533 = vmatprep.subr.bf16.mxu0 0
        %1534 = vmatpush1.bf16.msra.mxu0 0
        %1535 = vmatprep.subr.bf16.mxu0 0
        %1536 = vmatpush1.bf16.msra.mxu0 0
        %1537 = vmatprep.subr.bf16.mxu0 0
        %1538 = vmatpush1.bf16.msra.mxu0 0
        %1539 = vmatprep.subr.bf16.mxu0 0
        %1540 = vmatpush1.bf16.msra.mxu0 0
        %1541 = vmatprep.subr.bf16.mxu0 0
        %1542 = vmatpush1.bf16.msra.mxu0 0
        %1543 = vmatprep.mubr.bf16.mxu0 0
        %1544 = vmatmul.mubr.bf16.gmra.mrb[0].mxu0 %v1506
        %v1545 = vpop.f32.mrb[0].mxu0
        %v1546 = vadd.f32 0.0, %v1545
        %v1547 = vpop.f32.mrb[0].mxu0
        %v1548 = vpop.f32.mrb[0].mxu0
        %v1549 = vpop.f32.mrb[0].mxu0
        %1550 = vdwg.mxu0
        %1551 = vrot.lane.b32.xlu0 %v865, 64
        %v1552 = vpop.permute.xlu0 %1551
        %v1554 = vsel %vm872, %v1354, 0
        %v1557 = vsel %vm1363, %v1552, 0
        %1559 = vmatprep.subr.bf16.mxu0 0
        %1560 = vmatpush1.bf16.msra.mxu0 %v1557
        %1561 = vmatprep.subr.bf16.mxu0 0
        %1562 = vmatpush1.bf16.msra.mxu0 0
        %1563 = vmatprep.subr.bf16.mxu0 0
        %1564 = vmatpush1.bf16.msra.mxu0 0
        %1565 = vmatprep.subr.bf16.mxu0 0
        %1566 = vmatpush1.bf16.msra.mxu0 0
        %1567 = vmatprep.subr.bf16.mxu0 0
        %1568 = vmatpush1.bf16.msra.mxu0 0
        %1569 = vmatprep.subr.bf16.mxu0 0
        %1570 = vmatpush1.bf16.msra.mxu0 0
        %1571 = vmatprep.subr.bf16.mxu0 0
        %1572 = vmatpush1.bf16.msra.mxu0 0
        %1573 = vmatprep.subr.bf16.mxu0 0
        %1574 = vmatpush1.bf16.msra.mxu0 0
        %1575 = vmatprep.subr.bf16.mxu0 0
        %1576 = vmatpush1.bf16.msra.mxu0 0
        %1577 = vmatprep.subr.bf16.mxu0 0
        %1578 = vmatpush1.bf16.msra.mxu0 0
        %1579 = vmatprep.subr.bf16.mxu0 0
        %1580 = vmatpush1.bf16.msra.mxu0 0
        %1581 = vmatprep.subr.bf16.mxu0 0
        %1582 = vmatpush1.bf16.msra.mxu0 0
        %1583 = vmatprep.subr.bf16.mxu0 0
        %1584 = vmatpush1.bf16.msra.mxu0 0
        %1585 = vmatprep.subr.bf16.mxu0 0
        %1586 = vmatpush1.bf16.msra.mxu0 0
        %1587 = vmatprep.subr.bf16.mxu0 0
        %1588 = vmatpush1.bf16.msra.mxu0 0
        %1589 = vmatprep.subr.bf16.mxu0 0
        %1590 = vmatpush1.bf16.msra.mxu0 0
        %1591 = vmatprep.mubr.bf16.mxu0 0
        %1592 = vmatmul.mubr.bf16.gmra.mrb[0].mxu0 %v1554
        %v1593 = vpop.f32.mrb[0].mxu0
        %v1594 = vadd.f32 0.0, %v1593
        %v1595 = vpop.f32.mrb[0].mxu0
        %v1596 = vpop.f32.mrb[0].mxu0
        %v1597 = vpop.f32.mrb[0].mxu0
        %1598 = vdwg.mxu0
        %1599 = vrot.lane.b32.xlu0 %v866, 64
        %v1600 = vpop.permute.xlu0 %1599
        %v1602 = vsel %vm872, %v1355, 0
        %v1605 = vsel %vm1363, %v1600, 0
        %1607 = vmatprep.subr.bf16.mxu0 0
        %1608 = vmatpush1.bf16.msra.mxu0 %v1605
        %1609 = vmatprep.subr.bf16.mxu0 0
        %1610 = vmatpush1.bf16.msra.mxu0 0
        %1611 = vmatprep.subr.bf16.mxu0 0
        %1612 = vmatpush1.bf16.msra.mxu0 0
        %1613 = vmatprep.subr.bf16.mxu0 0
        %1614 = vmatpush1.bf16.msra.mxu0 0
        %1615 = vmatprep.subr.bf16.mxu0 0
        %1616 = vmatpush1.bf16.msra.mxu0 0
        %1617 = vmatprep.subr.bf16.mxu0 0
        %1618 = vmatpush1.bf16.msra.mxu0 0
        %1619 = vmatprep.subr.bf16.mxu0 0
        %1620 = vmatpush1.bf16.msra.mxu0 0
        %1621 = vmatprep.subr.bf16.mxu0 0
        %1622 = vmatpush1.bf16.msra.mxu0 0
        %1623 = vmatprep.subr.bf16.mxu0 0
        %1624 = vmatpush1.bf16.msra.mxu0 0
        %1625 = vmatprep.subr.bf16.mxu0 0
        %1626 = vmatpush1.bf16.msra.mxu0 0
        %1627 = vmatprep.subr.bf16.mxu0 0
        %1628 = vmatpush1.bf16.msra.mxu0 0
        %1629 = vmatprep.subr.bf16.mxu0 0
        %1630 = vmatpush1.bf16.msra.mxu0 0
        %1631 = vmatprep.subr.bf16.mxu0 0
        %1632 = vmatpush1.bf16.msra.mxu0 0
        %1633 = vmatprep.subr.bf16.mxu0 0
        %1634 = vmatpush1.bf16.msra.mxu0 0
        %1635 = vmatprep.subr.bf16.mxu0 0
        %1636 = vmatpush1.bf16.msra.mxu0 0
        %1637 = vmatprep.subr.bf16.mxu0 0
        %1638 = vmatpush1.bf16.msra.mxu0 0
        %1639 = vmatprep.mubr.bf16.mxu0 0
        %1640 = vmatmul.mubr.bf16.gmra.mrb[0].mxu0 %v1602
        %v1641 = vpop.f32.mrb[0].mxu0
        %v1642 = vadd.f32 0.0, %v1641
        %v1643 = vpop.f32.mrb[0].mxu0
        %v1644 = vpop.f32.mrb[0].mxu0
        %v1645 = vpop.f32.mrb[0].mxu0
        %1646 = vdwg.mxu0
        %1647 = vrot.lane.b32.xlu0 %v867, 64
        %v1648 = vpop.permute.xlu0 %1647
        %v1650 = vsel %vm872, %v1356, 0
        %v1653 = vsel %vm1363, %v1648, 0
        %1655 = vmatprep.subr.bf16.mxu0 0
        %1656 = vmatpush1.bf16.msra.mxu0 %v1653
        %1657 = vmatprep.subr.bf16.mxu0 0
        %1658 = vmatpush1.bf16.msra.mxu0 0
        %1659 = vmatprep.subr.bf16.mxu0 0
        %1660 = vmatpush1.bf16.msra.mxu0 0
        %1661 = vmatprep.subr.bf16.mxu0 0
        %1662 = vmatpush1.bf16.msra.mxu0 0
        %1663 = vmatprep.subr.bf16.mxu0 0
        %1664 = vmatpush1.bf16.msra.mxu0 0
        %1665 = vmatprep.subr.bf16.mxu0 0
        %1666 = vmatpush1.bf16.msra.mxu0 0
        %1667 = vmatprep.subr.bf16.mxu0 0
        %1668 = vmatpush1.bf16.msra.mxu0 0
        %1669 = vmatprep.subr.bf16.mxu0 0
        %1670 = vmatpush1.bf16.msra.mxu0 0
        %1671 = vmatprep.subr.bf16.mxu0 0
        %1672 = vmatpush1.bf16.msra.mxu0 0
        %1673 = vmatprep.subr.bf16.mxu0 0
        %1674 = vmatpush1.bf16.msra.mxu0 0
        %1675 = vmatprep.subr.bf16.mxu0 0
        %1676 = vmatpush1.bf16.msra.mxu0 0
        %1677 = vmatprep.subr.bf16.mxu0 0
        %1678 = vmatpush1.bf16.msra.mxu0 0
        %1679 = vmatprep.subr.bf16.mxu0 0
        %1680 = vmatpush1.bf16.msra.mxu0 0
        %1681 = vmatprep.subr.bf16.mxu0 0
        %1682 = vmatpush1.bf16.msra.mxu0 0
        %1683 = vmatprep.subr.bf16.mxu0 0
        %1684 = vmatpush1.bf16.msra.mxu0 0
        %1685 = vmatprep.subr.bf16.mxu0 0
        %1686 = vmatpush1.bf16.msra.mxu0 0
        %1687 = vmatprep.mubr.bf16.mxu0 0
        %1688 = vmatmul.mubr.bf16.gmra.mrb[0].mxu0 %v1650
        %v1689 = vpop.f32.mrb[0].mxu0
        %v1690 = vadd.f32 0.0, %v1689
        %v1691 = vpop.f32.mrb[0].mxu0
        %v1692 = vpop.f32.mrb[0].mxu0
        %v1693 = vpop.f32.mrb[0].mxu0
        %1694 = vdwg.mxu0
        %1695 = vrot.lane.b32.xlu0 %v868, 64
        %v1696 = vpop.permute.xlu0 %1695
        %v1698 = vsel %vm872, %v1357, 0
        %v1701 = vsel %vm1363, %v1696, 0
        %1703 = vmatprep.subr.bf16.mxu0 0
        %1704 = vmatpush1.bf16.msra.mxu0 %v1701
        %1705 = vmatprep.subr.bf16.mxu0 0
        %1706 = vmatpush1.bf16.msra.mxu0 0
        %1707 = vmatprep.subr.bf16.mxu0 0
        %1708 = vmatpush1.bf16.msra.mxu0 0
        %1709 = vmatprep.subr.bf16.mxu0 0
        %1710 = vmatpush1.bf16.msra.mxu0 0
        %1711 = vmatprep.subr.bf16.mxu0 0
        %1712 = vmatpush1.bf16.msra.mxu0 0
        %1713 = vmatprep.subr.bf16.mxu0 0
        %1714 = vmatpush1.bf16.msra.mxu0 0
        %1715 = vmatprep.subr.bf16.mxu0 0
        %1716 = vmatpush1.bf16.msra.mxu0 0
        %1717 = vmatprep.subr.bf16.mxu0 0
        %1718 = vmatpush1.bf16.msra.mxu0 0
        %1719 = vmatprep.subr.bf16.mxu0 0
        %1720 = vmatpush1.bf16.msra.mxu0 0
        %1721 = vmatprep.subr.bf16.mxu0 0
        %1722 = vmatpush1.bf16.msra.mxu0 0
        %1723 = vmatprep.subr.bf16.mxu0 0
        %1724 = vmatpush1.bf16.msra.mxu0 0
        %1725 = vmatprep.subr.bf16.mxu0 0
        %1726 = vmatpush1.bf16.msra.mxu0 0
        %1727 = vmatprep.subr.bf16.mxu0 0
        %1728 = vmatpush1.bf16.msra.mxu0 0
        %1729 = vmatprep.subr.bf16.mxu0 0
        %1730 = vmatpush1.bf16.msra.mxu0 0
        %1731 = vmatprep.subr.bf16.mxu0 0
        %1732 = vmatpush1.bf16.msra.mxu0 0
        %1733 = vmatprep.subr.bf16.mxu0 0
        %1734 = vmatpush1.bf16.msra.mxu0 0
        %1735 = vmatprep.mubr.bf16.mxu0 0
        %1736 = vmatmul.mubr.bf16.gmra.mrb[0].mxu0 %v1698
        %v1737 = vpop.f32.mrb[0].mxu0
        %v1738 = vadd.f32 0.0, %v1737
        %v1739 = vpop.f32.mrb[0].mxu0
        %v1740 = vpop.f32.mrb[0].mxu0
        %v1741 = vpop.f32.mrb[0].mxu0
        %1742 = vdwg.mxu0
        %v1743 = vpack.c.bf16 %v1402, %v1402
        %v1744 = vpack.c.bf16 %v1450, %v1450
        %v1745 = vpack.c.bf16 %v1498, %v1498
        %v1746 = vpack.c.bf16 %v1546, %v1546
        %v1747 = vpack.c.bf16 %v1594, %v1594
        %v1748 = vpack.c.bf16 %v1642, %v1642
        %v1749 = vpack.c.bf16 %v1690, %v1690
        %v1750 = vpack.c.bf16 %v1738, %v1738
        %v1751 = vld [vmem:[%s702] sm:$0xf]
        %v1752 = vld [vmem:[%s702 + $0x4] sm:$0xf]
        %v1753 = vld [vmem:[%s702 + $0x8] sm:$0xf]
        %v1754 = vld [vmem:[%s702 + $0xc] sm:$0xf]
        %v1755 = vld [vmem:[%s702 + $0x10] sm:$0xf]
        %v1756 = vld [vmem:[%s702 + $0x14] sm:$0xf]
        %v1757 = vld [vmem:[%s702 + $0x18] sm:$0xf]
        %v1758 = vld [vmem:[%s702 + $0x1c] sm:$0xf]
        %v1760 = vsel %vm872, %v1743, 0
        %v1763 = vsel %vm1363, %v1751, 0
        %1765 = vmatprep.subr.bf16.mxu0 0
        %1766 = vmatpush1.bf16.msra.mxu0 %v1763
        %1767 = vmatprep.subr.bf16.mxu0 0
        %1768 = vmatpush1.bf16.msra.mxu0 0
        %1769 = vmatprep.subr.bf16.mxu0 0
        %1770 = vmatpush1.bf16.msra.mxu0 0
        %1771 = vmatprep.subr.bf16.mxu0 0
        %1772 = vmatpush1.bf16.msra.mxu0 0
        %1773 = vmatprep.subr.bf16.mxu0 0
        %1774 = vmatpush1.bf16.msra.mxu0 0
        %1775 = vmatprep.subr.bf16.mxu0 0
        %1776 = vmatpush1.bf16.msra.mxu0 0
        %1777 = vmatprep.subr.bf16.mxu0 0
        %1778 = vmatpush1.bf16.msra.mxu0 0
        %1779 = vmatprep.subr.bf16.mxu0 0
        %1780 = vmatpush1.bf16.msra.mxu0 0
        %1781 = vmatprep.subr.bf16.mxu0 0
        %1782 = vmatpush1.bf16.msra.mxu0 0
        %1783 = vmatprep.subr.bf16.mxu0 0
        %1784 = vmatpush1.bf16.msra.mxu0 0
        %1785 = vmatprep.subr.bf16.mxu0 0
        %1786 = vmatpush1.bf16.msra.mxu0 0
        %1787 = vmatprep.subr.bf16.mxu0 0
        %1788 = vmatpush1.bf16.msra.mxu0 0
        %1789 = vmatprep.subr.bf16.mxu0 0
        %1790 = vmatpush1.bf16.msra.mxu0 0
        %1791 = vmatprep.subr.bf16.mxu0 0
        %1792 = vmatpush1.bf16.msra.mxu0 0
        %1793 = vmatprep.subr.bf16.mxu0 0
        %1794 = vmatpush1.bf16.msra.mxu0 0
        %1795 = vmatprep.subr.bf16.mxu0 0
        %1796 = vmatpush1.bf16.msra.mxu0 0
        %1797 = vmatprep.mubr.bf16.mxu0 0
        %1798 = vmatmul.mubr.bf16.gmra.mrb[0].mxu0 %v1760
        %v1799 = vpop.f32.mrb[0].mxu0
        %v1800 = vadd.f32 0.0, %v1799
        %v1801 = vpop.f32.mrb[0].mxu0
        %v1802 = vpop.f32.mrb[0].mxu0
        %v1803 = vpop.f32.mrb[0].mxu0
        %1804 = vdwg.mxu0
        %v1806 = vsel %vm872, %v1744, 0
        %v1809 = vsel %vm1363, %v1752, 0
        %1811 = vmatprep.subr.bf16.mxu0 0
        %1812 = vmatpush1.bf16.msra.mxu0 %v1809
        %1813 = vmatprep.subr.bf16.mxu0 0
        %1814 = vmatpush1.bf16.msra.mxu0 0
        %1815 = vmatprep.subr.bf16.mxu0 0
        %1816 = vmatpush1.bf16.msra.mxu0 0
        %1817 = vmatprep.subr.bf16.mxu0 0
        %1818 = vmatpush1.bf16.msra.mxu0 0
        %1819 = vmatprep.subr.bf16.mxu0 0
        %1820 = vmatpush1.bf16.msra.mxu0 0
        %1821 = vmatprep.subr.bf16.mxu0 0
        %1822 = vmatpush1.bf16.msra.mxu0 0
        %1823 = vmatprep.subr.bf16.mxu0 0
        %1824 = vmatpush1.bf16.msra.mxu0 0
        %1825 = vmatprep.subr.bf16.mxu0 0
        %1826 = vmatpush1.bf16.msra.mxu0 0
        %1827 = vmatprep.subr.bf16.mxu0 0
        %1828 = vmatpush1.bf16.msra.mxu0 0
        %1829 = vmatprep.subr.bf16.mxu0 0
        %1830 = vmatpush1.bf16.msra.mxu0 0
        %1831 = vmatprep.subr.bf16.mxu0 0
        %1832 = vmatpush1.bf16.msra.mxu0 0
        %1833 = vmatprep.subr.bf16.mxu0 0
        %1834 = vmatpush1.bf16.msra.mxu0 0
        %1835 = vmatprep.subr.bf16.mxu0 0
        %1836 = vmatpush1.bf16.msra.mxu0 0
        %1837 = vmatprep.subr.bf16.mxu0 0
        %1838 = vmatpush1.bf16.msra.mxu0 0
        %1839 = vmatprep.subr.bf16.mxu0 0
        %1840 = vmatpush1.bf16.msra.mxu0 0
        %1841 = vmatprep.subr.bf16.mxu0 0
        %1842 = vmatpush1.bf16.msra.mxu0 0
        %1843 = vmatprep.mubr.bf16.mxu0 0
        %1844 = vmatmul.mubr.bf16.gmra.mrb[0].mxu0 %v1806
        %v1845 = vpop.f32.mrb[0].mxu0
        %v1846 = vadd.f32 0.0, %v1845
        %v1847 = vpop.f32.mrb[0].mxu0
        %v1848 = vpop.f32.mrb[0].mxu0
        %v1849 = vpop.f32.mrb[0].mxu0
        %1850 = vdwg.mxu0
        %v1852 = vsel %vm872, %v1745, 0
        %v1855 = vsel %vm1363, %v1753, 0
        %1857 = vmatprep.subr.bf16.mxu0 0
        %1858 = vmatpush1.bf16.msra.mxu0 %v1855
        %1859 = vmatprep.subr.bf16.mxu0 0
        %1860 = vmatpush1.bf16.msra.mxu0 0
        %1861 = vmatprep.subr.bf16.mxu0 0
        %1862 = vmatpush1.bf16.msra.mxu0 0
        %1863 = vmatprep.subr.bf16.mxu0 0
        %1864 = vmatpush1.bf16.msra.mxu0 0
        %1865 = vmatprep.subr.bf16.mxu0 0
        %1866 = vmatpush1.bf16.msra.mxu0 0
        %1867 = vmatprep.subr.bf16.mxu0 0
        %1868 = vmatpush1.bf16.msra.mxu0 0
        %1869 = vmatprep.subr.bf16.mxu0 0
        %1870 = vmatpush1.bf16.msra.mxu0 0
        %1871 = vmatprep.subr.bf16.mxu0 0
        %1872 = vmatpush1.bf16.msra.mxu0 0
        %1873 = vmatprep.subr.bf16.mxu0 0
        %1874 = vmatpush1.bf16.msra.mxu0 0
        %1875 = vmatprep.subr.bf16.mxu0 0
        %1876 = vmatpush1.bf16.msra.mxu0 0
        %1877 = vmatprep.subr.bf16.mxu0 0
        %1878 = vmatpush1.bf16.msra.mxu0 0
        %1879 = vmatprep.subr.bf16.mxu0 0
        %1880 = vmatpush1.bf16.msra.mxu0 0
        %1881 = vmatprep.subr.bf16.mxu0 0
        %1882 = vmatpush1.bf16.msra.mxu0 0
        %1883 = vmatprep.subr.bf16.mxu0 0
        %1884 = vmatpush1.bf16.msra.mxu0 0
        %1885 = vmatprep.subr.bf16.mxu0 0
        %1886 = vmatpush1.bf16.msra.mxu0 0
        %1887 = vmatprep.subr.bf16.mxu0 0
        %1888 = vmatpush1.bf16.msra.mxu0 0
        %1889 = vmatprep.mubr.bf16.mxu0 0
        %1890 = vmatmul.mubr.bf16.gmra.mrb[0].mxu0 %v1852
        %v1891 = vpop.f32.mrb[0].mxu0
        %v1892 = vadd.f32 0.0, %v1891
        %v1893 = vpop.f32.mrb[0].mxu0
        %v1894 = vpop.f32.mrb[0].mxu0
        %v1895 = vpop.f32.mrb[0].mxu0
        %1896 = vdwg.mxu0
        %v1898 = vsel %vm872, %v1746, 0
        %v1901 = vsel %vm1363, %v1754, 0
        %1903 = vmatprep.subr.bf16.mxu0 0
        %1904 = vmatpush1.bf16.msra.mxu0 %v1901
        %1905 = vmatprep.subr.bf16.mxu0 0
        %1906 = vmatpush1.bf16.msra.mxu0 0
        %1907 = vmatprep.subr.bf16.mxu0 0
        %1908 = vmatpush1.bf16.msra.mxu0 0
        %1909 = vmatprep.subr.bf16.mxu0 0
        %1910 = vmatpush1.bf16.msra.mxu0 0
        %1911 = vmatprep.subr.bf16.mxu0 0
        %1912 = vmatpush1.bf16.msra.mxu0 0
        %1913 = vmatprep.subr.bf16.mxu0 0
        %1914 = vmatpush1.bf16.msra.mxu0 0
        %1915 = vmatprep.subr.bf16.mxu0 0
        %1916 = vmatpush1.bf16.msra.mxu0 0
        %1917 = vmatprep.subr.bf16.mxu0 0
        %1918 = vmatpush1.bf16.msra.mxu0 0
        %1919 = vmatprep.subr.bf16.mxu0 0
        %1920 = vmatpush1.bf16.msra.mxu0 0
        %1921 = vmatprep.subr.bf16.mxu0 0
        %1922 = vmatpush1.bf16.msra.mxu0 0
        %1923 = vmatprep.subr.bf16.mxu0 0
        %1924 = vmatpush1.bf16.msra.mxu0 0
        %1925 = vmatprep.subr.bf16.mxu0 0
        %1926 = vmatpush1.bf16.msra.mxu0 0
        %1927 = vmatprep.subr.bf16.mxu0 0
        %1928 = vmatpush1.bf16.msra.mxu0 0
        %1929 = vmatprep.subr.bf16.mxu0 0
        %1930 = vmatpush1.bf16.msra.mxu0 0
        %1931 = vmatprep.subr.bf16.mxu0 0
        %1932 = vmatpush1.bf16.msra.mxu0 0
        %1933 = vmatprep.subr.bf16.mxu0 0
        %1934 = vmatpush1.bf16.msra.mxu0 0
        %1935 = vmatprep.mubr.bf16.mxu0 0
        %1936 = vmatmul.mubr.bf16.gmra.mrb[0].mxu0 %v1898
        %v1937 = vpop.f32.mrb[0].mxu0
        %v1938 = vadd.f32 0.0, %v1937
        %v1939 = vpop.f32.mrb[0].mxu0
        %v1940 = vpop.f32.mrb[0].mxu0
        %v1941 = vpop.f32.mrb[0].mxu0
        %1942 = vdwg.mxu0
        %v1944 = vsel %vm872, %v1747, 0
        %v1947 = vsel %vm1363, %v1755, 0
        %1949 = vmatprep.subr.bf16.mxu0 0
        %1950 = vmatpush1.bf16.msra.mxu0 %v1947
        %1951 = vmatprep.subr.bf16.mxu0 0
        %1952 = vmatpush1.bf16.msra.mxu0 0
        %1953 = vmatprep.subr.bf16.mxu0 0
        %1954 = vmatpush1.bf16.msra.mxu0 0
        %1955 = vmatprep.subr.bf16.mxu0 0
        %1956 = vmatpush1.bf16.msra.mxu0 0
        %1957 = vmatprep.subr.bf16.mxu0 0
        %1958 = vmatpush1.bf16.msra.mxu0 0
        %1959 = vmatprep.subr.bf16.mxu0 0
        %1960 = vmatpush1.bf16.msra.mxu0 0
        %1961 = vmatprep.subr.bf16.mxu0 0
        %1962 = vmatpush1.bf16.msra.mxu0 0
        %1963 = vmatprep.subr.bf16.mxu0 0
        %1964 = vmatpush1.bf16.msra.mxu0 0
        %1965 = vmatprep.subr.bf16.mxu0 0
        %1966 = vmatpush1.bf16.msra.mxu0 0
        %1967 = vmatprep.subr.bf16.mxu0 0
        %1968 = vmatpush1.bf16.msra.mxu0 0
        %1969 = vmatprep.subr.bf16.mxu0 0
        %1970 = vmatpush1.bf16.msra.mxu0 0
        %1971 = vmatprep.subr.bf16.mxu0 0
        %1972 = vmatpush1.bf16.msra.mxu0 0
        %1973 = vmatprep.subr.bf16.mxu0 0
        %1974 = vmatpush1.bf16.msra.mxu0 0
        %1975 = vmatprep.subr.bf16.mxu0 0
        %1976 = vmatpush1.bf16.msra.mxu0 0
        %1977 = vmatprep.subr.bf16.mxu0 0
        %1978 = vmatpush1.bf16.msra.mxu0 0
        %1979 = vmatprep.subr.bf16.mxu0 0
        %1980 = vmatpush1.bf16.msra.mxu0 0
        %1981 = vmatprep.mubr.bf16.mxu0 0
        %1982 = vmatmul.mubr.bf16.gmra.mrb[0].mxu0 %v1944
        %v1983 = vpop.f32.mrb[0].mxu0
        %v1984 = vadd.f32 0.0, %v1983
        %v1985 = vpop.f32.mrb[0].mxu0
        %v1986 = vpop.f32.mrb[0].mxu0
        %v1987 = vpop.f32.mrb[0].mxu0
        %1988 = vdwg.mxu0
        %v1990 = vsel %vm872, %v1748, 0
        %v1993 = vsel %vm1363, %v1756, 0
        %1995 = vmatprep.subr.bf16.mxu0 0
        %1996 = vmatpush1.bf16.msra.mxu0 %v1993
        %1997 = vmatprep.subr.bf16.mxu0 0
        %1998 = vmatpush1.bf16.msra.mxu0 0
        %1999 = vmatprep.subr.bf16.mxu0 0
        %2000 = vmatpush1.bf16.msra.mxu0 0
        %2001 = vmatprep.subr.bf16.mxu0 0
        %2002 = vmatpush1.bf16.msra.mxu0 0
        %2003 = vmatprep.subr.bf16.mxu0 0
        %2004 = vmatpush1.bf16.msra.mxu0 0
        %2005 = vmatprep.subr.bf16.mxu0 0
        %2006 = vmatpush1.bf16.msra.mxu0 0
        %2007 = vmatprep.subr.bf16.mxu0 0
        %2008 = vmatpush1.bf16.msra.mxu0 0
        %2009 = vmatprep.subr.bf16.mxu0 0
        %2010 = vmatpush1.bf16.msra.mxu0 0
        %2011 = vmatprep.subr.bf16.mxu0 0
        %2012 = vmatpush1.bf16.msra.mxu0 0
        %2013 = vmatprep.subr.bf16.mxu0 0
        %2014 = vmatpush1.bf16.msra.mxu0 0
        %2015 = vmatprep.subr.bf16.mxu0 0
        %2016 = vmatpush1.bf16.msra.mxu0 0
        %2017 = vmatprep.subr.bf16.mxu0 0
        %2018 = vmatpush1.bf16.msra.mxu0 0
        %2019 = vmatprep.subr.bf16.mxu0 0
        %2020 = vmatpush1.bf16.msra.mxu0 0
        %2021 = vmatprep.subr.bf16.mxu0 0
        %2022 = vmatpush1.bf16.msra.mxu0 0
        %2023 = vmatprep.subr.bf16.mxu0 0
        %2024 = vmatpush1.bf16.msra.mxu0 0
        %2025 = vmatprep.subr.bf16.mxu0 0
        %2026 = vmatpush1.bf16.msra.mxu0 0
        %2027 = vmatprep.mubr.bf16.mxu0 0
        %2028 = vmatmul.mubr.bf16.gmra.mrb[0].mxu0 %v1990
        %v2029 = vpop.f32.mrb[0].mxu0
        %v2030 = vadd.f32 0.0, %v2029
        %v2031 = vpop.f32.mrb[0].mxu0
        %v2032 = vpop.f32.mrb[0].mxu0
        %v2033 = vpop.f32.mrb[0].mxu0
        %2034 = vdwg.mxu0
        %v2036 = vsel %vm872, %v1749, 0
        %v2039 = vsel %vm1363, %v1757, 0
        %2041 = vmatprep.subr.bf16.mxu0 0
        %2042 = vmatpush1.bf16.msra.mxu0 %v2039
        %2043 = vmatprep.subr.bf16.mxu0 0
        %2044 = vmatpush1.bf16.msra.mxu0 0
        %2045 = vmatprep.subr.bf16.mxu0 0
        %2046 = vmatpush1.bf16.msra.mxu0 0
        %2047 = vmatprep.subr.bf16.mxu0 0
        %2048 = vmatpush1.bf16.msra.mxu0 0
        %2049 = vmatprep.subr.bf16.mxu0 0
        %2050 = vmatpush1.bf16.msra.mxu0 0
        %2051 = vmatprep.subr.bf16.mxu0 0
        %2052 = vmatpush1.bf16.msra.mxu0 0
        %2053 = vmatprep.subr.bf16.mxu0 0
        %2054 = vmatpush1.bf16.msra.mxu0 0
        %2055 = vmatprep.subr.bf16.mxu0 0
        %2056 = vmatpush1.bf16.msra.mxu0 0
        %2057 = vmatprep.subr.bf16.mxu0 0
        %2058 = vmatpush1.bf16.msra.mxu0 0
        %2059 = vmatprep.subr.bf16.mxu0 0
        %2060 = vmatpush1.bf16.msra.mxu0 0
        %2061 = vmatprep.subr.bf16.mxu0 0
        %2062 = vmatpush1.bf16.msra.mxu0 0
        %2063 = vmatprep.subr.bf16.mxu0 0
        %2064 = vmatpush1.bf16.msra.mxu0 0
        %2065 = vmatprep.subr.bf16.mxu0 0
        %2066 = vmatpush1.bf16.msra.mxu0 0
        %2067 = vmatprep.subr.bf16.mxu0 0
        %2068 = vmatpush1.bf16.msra.mxu0 0
        %2069 = vmatprep.subr.bf16.mxu0 0
        %2070 = vmatpush1.bf16.msra.mxu0 0
        %2071 = vmatprep.subr.bf16.mxu0 0
        %2072 = vmatpush1.bf16.msra.mxu0 0
        %2073 = vmatprep.mubr.bf16.mxu0 0
        %2074 = vmatmul.mubr.bf16.gmra.mrb[0].mxu0 %v2036
        %v2075 = vpop.f32.mrb[0].mxu0
        %v2076 = vadd.f32 0.0, %v2075
        %v2077 = vpop.f32.mrb[0].mxu0
        %v2078 = vpop.f32.mrb[0].mxu0
        %v2079 = vpop.f32.mrb[0].mxu0
        %2080 = vdwg.mxu0
        %v2082 = vsel %vm872, %v1750, 0
        %v2085 = vsel %vm1363, %v1758, 0
        %2087 = vmatprep.subr.bf16.mxu0 0
        %2088 = vmatpush1.bf16.msra.mxu0 %v2085
        %2089 = vmatprep.subr.bf16.mxu0 0
        %2090 = vmatpush1.bf16.msra.mxu0 0
        %2091 = vmatprep.subr.bf16.mxu0 0
        %2092 = vmatpush1.bf16.msra.mxu0 0
        %2093 = vmatprep.subr.bf16.mxu0 0
        %2094 = vmatpush1.bf16.msra.mxu0 0
        %2095 = vmatprep.subr.bf16.mxu0 0
        %2096 = vmatpush1.bf16.msra.mxu0 0
        %2097 = vmatprep.subr.bf16.mxu0 0
        %2098 = vmatpush1.bf16.msra.mxu0 0
        %2099 = vmatprep.subr.bf16.mxu0 0
        %2100 = vmatpush1.bf16.msra.mxu0 0
        %2101 = vmatprep.subr.bf16.mxu0 0
        %2102 = vmatpush1.bf16.msra.mxu0 0
        %2103 = vmatprep.subr.bf16.mxu0 0
        %2104 = vmatpush1.bf16.msra.mxu0 0
        %2105 = vmatprep.subr.bf16.mxu0 0
        %2106 = vmatpush1.bf16.msra.mxu0 0
        %2107 = vmatprep.subr.bf16.mxu0 0
        %2108 = vmatpush1.bf16.msra.mxu0 0
        %2109 = vmatprep.subr.bf16.mxu0 0
        %2110 = vmatpush1.bf16.msra.mxu0 0
        %2111 = vmatprep.subr.bf16.mxu0 0
        %2112 = vmatpush1.bf16.msra.mxu0 0
        %2113 = vmatprep.subr.bf16.mxu0 0
        %2114 = vmatpush1.bf16.msra.mxu0 0
        %2115 = vmatprep.subr.bf16.mxu0 0
        %2116 = vmatpush1.bf16.msra.mxu0 0
        %2117 = vmatprep.subr.bf16.mxu0 0
        %2118 = vmatpush1.bf16.msra.mxu0 0
        %2119 = vmatprep.mubr.bf16.mxu0 0
        %2120 = vmatmul.mubr.bf16.gmra.mrb[0].mxu0 %v2082
        %v2121 = vpop.f32.mrb[0].mxu0
        %v2122 = vadd.f32 0.0, %v2121
        %v2123 = vpop.f32.mrb[0].mxu0
        %v2124 = vpop.f32.mrb[0].mxu0
        %v2125 = vpop.f32.mrb[0].mxu0
        %2126 = vdwg.mxu0
        %v2127 = vsel %vm729, %v1800, 0.0
        %v2128 = vsel %vm729, %v1892, 0.0
        %v2129 = vadd.f32 %v2127, %v2128
        %v2130 = vsel %vm729, %v1984, 0.0
        %v2131 = vadd.f32 %v2129, %v2130
        %v2132 = vsel %vm729, %v2076, 0.0
        %v2133 = vadd.f32 %v2131, %v2132
        %v2134 = vsel %vm729, %v1846, 0.0
        %v2135 = vsel %vm729, %v1938, 0.0
        %v2136 = vadd.f32 %v2134, %v2135
        %v2137 = vsel %vm729, %v2030, 0.0
        %v2138 = vadd.f32 %v2136, %v2137
        %v2139 = vsel %vm729, %v2122, 0.0
        %v2140 = vadd.f32 %v2138, %v2139
        %v2141 = vadd.f32 %v725, %v2133
        %v2142 = vadd.f32 %v726, %v2140
        %v2143 = vld [vmem:[%s705] sm:$0x1]
        %v2145 = vlaneseq
        %v2146 = vshrl.u32 %v2145, 7
        %v2147 = vsub.s32 0, %v2146
        %v2148 = vrot.slane %v2143, %v2147
        %v2150 = vadd.f32 %v2141, %v2148
        %v2151 = vadd.f32 %v2142, %v2148
        %v2152 = vld [vmem:[%s578] sm:$0x1]
        %v2153 = vld [vmem:[%s586] sm:$0x1]
        %v2154 = vsel %vm729, %v2150, 0.0
        %2155 = vadd.xlane.f32.xlu0 %v2154
        %v2156 = vpop.xlane.xlu0 %2155
        %v2157 = vsel %vm729, %v2151, 0.0
        %2158 = vadd.xlane.f32.xlu0 %v2157
        %v2159 = vpop.xlane.xlu0 %2158
        %v2160 = vmul.f32 %v2156, %v736
        %v2161 = vmul.f32 %v2159, %v736
        %v2162 = vsub.f32 %v2150, %v2160
        %v2163 = vsub.f32 %v2151, %v2161
        %v2164 = vmul.f32 %v2162, %v2162
        %v2165 = vmul.f32 %v2163, %v2163
        %v2166 = vsel %vm729, %v2164, 0.0
        %2167 = vadd.xlane.f32.xlu0 %v2166
        %v2168 = vpop.xlane.xlu0 %2167
        %v2169 = vsel %vm729, %v2165, 0.0
        %2170 = vadd.xlane.f32.xlu0 %v2169
        %v2171 = vpop.xlane.xlu0 %2170
        %v2172 = vmul.f32 %v2168, %v736
        %v2173 = vmul.f32 %v2171, %v736
        %v2174 = vadd.f32 %v2172, 1e-05
        %v2175 = vadd.f32 %v2173, 1e-05
        %v2176 = vrsqrt.pop %v2174
        %v2177 = vrsqrt.pop %v2175
        %v2178 = vmul.f32 %v2162, %v2176
        %v2179 = vmul.f32 %v2163, %v2177
        %v2181 = vlaneseq
        %v2182 = vshrl.u32 %v2181, 7
        %v2183 = vsub.s32 0, %v2182
        %v2184 = vrot.slane %v2152, %v2183
        %v2186 = vmul.f32 %v2178, %v2184
        %v2187 = vmul.f32 %v2179, %v2184
        %v2189 = vlaneseq
        %v2190 = vshrl.u32 %v2189, 7
        %v2191 = vsub.s32 0, %v2190
        %v2192 = vrot.slane %v2153, %v2191
        %v2194 = vadd.f32 %v2186, %v2192
        %v2195 = vadd.f32 %v2187, %v2192
        %v2196 = vpack.c.bf16 %v2195, %v2194
        %v2197 = vld [vmem:[%s595] sm:$0xf]
        %v2198 = vld [vmem:[%s595 + $0x4] sm:$0xf]
        %v2199 = vld [vmem:[%s595 + $0x8] sm:$0xf]
        %v2200 = vld [vmem:[%s595 + $0xc] sm:$0xf]
        %v2201 = vld [vmem:[%s603] sm:$0x1]
        %v2203 = vlaneseq
        %v2204 = vshrl.u32 %v2203, 7
        %v2205 = vsub.s32 0, %v2204
        %v2206 = vrot.slane %v2201, %v2205
        %v2212 = vunpack.c.l.b16 %v2197
        %v2213 = vunpack.c.l.b16 %v2198
        %v2214 = vunpack.c.l.b16 %v2199
        %v2215 = vunpack.c.l.b16 %v2200
        %v2216 = vpack.c.b16 %v2213, %v2212
        %v2217 = vpack.c.b16 %v2215, %v2214
        %v2221 = vsel %vm729, %v2196, 0
        %2223 = vmatprep.subr.bf16.mxu0 0
        %2224 = vmatpush1.bf16.msra.mxu0 %v2216
        %2225 = vmatprep.subr.bf16.mxu0 0
        %2226 = vmatpush1.bf16.msra.mxu0 %v2217
        %2227 = vmatprep.subr.bf16.mxu0 0
        %2228 = vmatpush1.bf16.msra.mxu0 0
        %2229 = vmatprep.subr.bf16.mxu0 0
        %2230 = vmatpush1.bf16.msra.mxu0 0
        %2231 = vmatprep.subr.bf16.mxu0 0
        %2232 = vmatpush1.bf16.msra.mxu0 0
        %2233 = vmatprep.subr.bf16.mxu0 0
        %2234 = vmatpush1.bf16.msra.mxu0 0
        %2235 = vmatprep.subr.bf16.mxu0 0
        %2236 = vmatpush1.bf16.msra.mxu0 0
        %2237 = vmatprep.subr.bf16.mxu0 0
        %2238 = vmatpush1.bf16.msra.mxu0 0
        %2239 = vmatprep.subr.bf16.mxu0 0
        %2240 = vmatpush1.bf16.msra.mxu0 0
        %2241 = vmatprep.subr.bf16.mxu0 0
        %2242 = vmatpush1.bf16.msra.mxu0 0
        %2243 = vmatprep.subr.bf16.mxu0 0
        %2244 = vmatpush1.bf16.msra.mxu0 0
        %2245 = vmatprep.subr.bf16.mxu0 0
        %2246 = vmatpush1.bf16.msra.mxu0 0
        %2247 = vmatprep.subr.bf16.mxu0 0
        %2248 = vmatpush1.bf16.msra.mxu0 0
        %2249 = vmatprep.subr.bf16.mxu0 0
        %2250 = vmatpush1.bf16.msra.mxu0 0
        %2251 = vmatprep.subr.bf16.mxu0 0
        %2252 = vmatpush1.bf16.msra.mxu0 0
        %2253 = vmatprep.subr.bf16.mxu0 0
        %2254 = vmatpush1.bf16.msra.mxu0 0
        %2255 = vmatprep.mubr.bf16.mxu0 0
        %2256 = vmatmul.mubr.bf16.gmra.mrb[0].mxu0 %v2221
        %v2257 = vpop.f32.mrb[0].mxu0
        %v2258 = vadd.f32 %v2206, %v2257
        %v2259 = vpop.f32.mrb[0].mxu0
        %v2260 = vpop.f32.mrb[0].mxu0
        %v2261 = vadd.f32 %v2206, %v2260
        %v2262 = vpop.f32.mrb[0].mxu0
        %2263 = vdwg.mxu0
        %v2264 = vmul.f32 %v2258, 0.5
        %v2265 = vmul.f32 %v2261, 0.5
        %v2266 = vmul.f32 %v2258, 0.70710677
        %v2267 = vmul.f32 %v2261, 0.70710677
        %v2268 = vand.u32 2147483647, %v2266
        %v2269 = vand.u32 2147483647, %v2267
        %v2270 = vmul.f32 %v2268, 0.3275911
        %v2271 = vmul.f32 %v2269, 0.3275911
        %v2272 = vadd.f32 %v2270, 1.0
        %v2273 = vadd.f32 %v2271, 1.0
        %v2274 = vrcp.pop %v2272
        %v2275 = vmul.f32 1.0, %v2274
        %v2276 = vrcp.pop %v2273
        %v2277 = vmul.f32 1.0, %v2276
        %v2278 = vmul.f32 %v2275, 1.0614054
        %v2279 = vmul.f32 %v2277, 1.0614054
        %v2280 = vadd.f32 %v2278, -1.4531521
        %v2281 = vadd.f32 %v2279, -1.4531521
        %v2282 = vmul.f32 %v2275, %v2280
        %v2283 = vmul.f32 %v2277, %v2281
        %v2284 = vadd.f32 %v2282, 1.4214138
        %v2285 = vadd.f32 %v2283, 1.4214138
        %v2286 = vmul.f32 %v2275, %v2284
        %v2287 = vmul.f32 %v2277, %v2285
        %v2288 = vadd.f32 %v2286, -0.28449672
        %v2289 = vadd.f32 %v2287, -0.28449672
        %v2290 = vmul.f32 %v2275, %v2288
        %v2291 = vmul.f32 %v2277, %v2289
        %v2292 = vadd.f32 %v2290, 0.2548296
        %v2293 = vadd.f32 %v2291, 0.2548296
        %v2294 = vmul.f32 %v2275, %v2292
        %v2295 = vmul.f32 %v2277, %v2293
        %v2296 = vmul.f32 %v2268, %v2268
        %v2297 = vmul.f32 %v2269, %v2269
        %v2298 = vsub.f32 0.0, %v2296
        %v2299 = vsub.f32 0.0, %v2297
        %v2300 = vmul.f32 %v2298, 1.442695
        %v2301 = vpow.pop %v2300
        %v2302 = vmul.f32 %v2299, 1.442695
        %v2303 = vpow.pop %v2302
        %v2304 = vmul.f32 %v2294, %v2301
        %v2305 = vmul.f32 %v2295, %v2303
        %v2306 = vsub.f32 1.0, %v2304
        %v2307 = vsub.f32 1.0, %v2305
        %vm2308 = vcmp.ge.f32.partialorder %v2266, 0.0
        %vm2309 = vcmp.ge.f32.partialorder %v2267, 0.0
        %v2310 = vsub.f32 0.0, %v2306
        %v2311 = vsub.f32 0.0, %v2307
        %v2312 = vsel %vm2308, %v2306, %v2310
        %v2313 = vsel %vm2309, %v2307, %v2311
        %v2314 = vadd.f32 %v2312, 1.0
        %v2315 = vadd.f32 %v2313, 1.0
        %v2316 = vmul.f32 %v2264, %v2314
        %v2317 = vmul.f32 %v2265, %v2315
        %v2318 = vpack.c.bf16 %v2317, %v2316
        %v2319 = vld [vmem:[%s710] sm:$0xf]
        %v2320 = vld [vmem:[%s710 + $0x4] sm:$0xf]
        %v2321 = vld [vmem:[%s710 + $0x8] sm:$0xf]
        %v2322 = vld [vmem:[%s710 + $0xc] sm:$0xf]
        %v2323 = vld [vmem:[%s710 + $0x10] sm:$0xf]
        %v2324 = vld [vmem:[%s710 + $0x14] sm:$0xf]
        %v2325 = vld [vmem:[%s710 + $0x18] sm:$0xf]
        %v2326 = vld [vmem:[%s710 + $0x1c] sm:$0xf]
        %v2327 = vld [vmem:[%s713] sm:$0x1]
        %v2329 = vlaneseq
        %v2330 = vshrl.u32 %v2329, 7
        %v2331 = vsub.s32 0, %v2330
        %v2332 = vrot.slane %v2327, %v2331
        %v2342 = vunpack.c.l.b16 %v2319
        %v2343 = vunpack.c.l.b16 %v2320
        %v2344 = vunpack.c.l.b16 %v2321
        %v2345 = vunpack.c.l.b16 %v2322
        %v2346 = vunpack.c.l.b16 %v2323
        %v2347 = vunpack.c.l.b16 %v2324
        %v2348 = vunpack.c.l.b16 %v2325
        %v2349 = vunpack.c.l.b16 %v2326
        %v2350 = vpack.c.b16 %v2343, %v2342
        %v2351 = vpack.c.b16 %v2345, %v2344
        %v2352 = vpack.c.b16 %v2347, %v2346
        %v2353 = vpack.c.b16 %v2349, %v2348
        %vm2358 = vcmask 523264
        %v2360 = vsel %vm2358, %v2318, 0
        %2362 = vmatprep.subr.bf16.mxu0 0
        %2363 = vmatpush1.bf16.msra.mxu0 %v2350
        %2364 = vmatprep.subr.bf16.mxu0 0
        %2365 = vmatpush1.bf16.msra.mxu0 %v2351
        %2366 = vmatprep.subr.bf16.mxu0 0
        %2367 = vmatpush1.bf16.msra.mxu0 %v2352
        %2368 = vmatprep.subr.bf16.mxu0 0
        %2369 = vmatpush1.bf16.msra.mxu0 %v2353
        %2370 = vmatprep.subr.bf16.mxu0 0
        %2371 = vmatpush1.bf16.msra.mxu0 0
        %2372 = vmatprep.subr.bf16.mxu0 0
        %2373 = vmatpush1.bf16.msra.mxu0 0
        %2374 = vmatprep.subr.bf16.mxu0 0
        %2375 = vmatpush1.bf16.msra.mxu0 0
        %2376 = vmatprep.subr.bf16.mxu0 0
        %2377 = vmatpush1.bf16.msra.mxu0 0
        %2378 = vmatprep.subr.bf16.mxu0 0
        %2379 = vmatpush1.bf16.msra.mxu0 0
        %2380 = vmatprep.subr.bf16.mxu0 0
        %2381 = vmatpush1.bf16.msra.mxu0 0
        %2382 = vmatprep.subr.bf16.mxu0 0
        %2383 = vmatpush1.bf16.msra.mxu0 0
        %2384 = vmatprep.subr.bf16.mxu0 0
        %2385 = vmatpush1.bf16.msra.mxu0 0
        %2386 = vmatprep.subr.bf16.mxu0 0
        %2387 = vmatpush1.bf16.msra.mxu0 0
        %2388 = vmatprep.subr.bf16.mxu0 0
        %2389 = vmatpush1.bf16.msra.mxu0 0
        %2390 = vmatprep.subr.bf16.mxu0 0
        %2391 = vmatpush1.bf16.msra.mxu0 0
        %2392 = vmatprep.subr.bf16.mxu0 0
        %2393 = vmatpush1.bf16.msra.mxu0 0
        %2394 = vmatprep.mubr.bf16.mxu0 0
        %2395 = vmatmul.mubr.bf16.gmra.mrb[0].mxu0 %v2360
        %v2396 = vpop.f32.mrb[0].mxu0
        %v2397 = vadd.f32 %v2332, %v2396
        %v2398 = vpop.f32.mrb[0].mxu0
        %v2399 = vpop.f32.mrb[0].mxu0
        %v2400 = vadd.f32 %v2332, %v2399
        %v2401 = vpop.f32.mrb[0].mxu0
        %2402 = vdwg.mxu0
        %v2403 = vadd.f32 %v2150, %v2397
        %v2404 = vadd.f32 %v2151, %v2400
        %2405 = vst.msk [vmem:[#allocation2] sm:$0xff] %vm729, %v2403
        %2406 = vst.msk [vmem:[#allocation2 + $0x8] sm:$0xff] %vm729, %v2404
        %p2407 = scmp.eq.s32.totalorder %s37, 1
        // Predicated region
        $region97: #{tpu_custom_call.1} parent=71 // pred_check
          %p2408 = pneg %p2407
        $region98: #{tpu_custom_call.1} parent=71 // pred_check_branch
          %2410 = sbr.rel (%p2408) target = $region100
        $region99: #{tpu_custom_call.1} parent=71 // pred_region
          %2411 = vst.msk [vmem:[#allocation12] sm:$0xff] %vm729, %v2403
          %2412 = vst.msk [vmem:[#allocation12 + $0x8] sm:$0xff] %vm729, %v2404
        $region100: #{tpu_custom_call.1} parent=71 // pred_fallthru
          _
        // Predicated region
        $region101: #{tpu_custom_call.1} parent=71 // pred_check
          %p2413 = pneg %p400
        $region102: #{tpu_custom_call.1} parent=71 // pred_check_branch
          %2415 = sbr.rel (%p2413) target = $region104
        $region103: #{tpu_custom_call.1} parent=71 // pred_region
          %s2416 = smul.u32 2, %s36
          %s2418 = ssub.s32 256, 256
          %2419 = vsyncadd [#allocation5], %s2418
          %s2420 = smul.addr %s2416, 128
          %s2421 = scalar_lea.hbm %s13, %s2420
          %s2422 = sshll.u32 [#allocation12], 4
          %s2423 = int_to_ptr.vmem [resolvable:$true] %s2422
          %2428 = dma.vmem_to_hbm [thread:$0]  %s2423, 256, %s2421, [#allocation5], 128, 128, 8
        $region104: #{tpu_custom_call.1} parent=71 // pred_fallthru
          _
        // Predicated region
        $region105: #{tpu_custom_call.1} parent=71 // pred_check
          %p2429 = pneg %p400
        $region106: #{tpu_custom_call.1} parent=71 // pred_check_branch
          %2431 = sbr.rel (%p2429) target = $region108
        $region107: #{tpu_custom_call.1} parent=71 // pred_region
          %2432 = dma.done [#allocation5], 256
        $region108: #{tpu_custom_call.1} parent=71 // pred_fallthru
          _
      $region72: #{tpu_custom_call.1} parent=5 // pred_fallthru
        _
      %p2433 = scmp.le.s32.totalorder 2, %s27
      // Predicated region
      $region109: #{tpu_custom_call.1} parent=5 // pred_check
        %p2434 = pneg %p2433
      $region110: #{tpu_custom_call.1} parent=5 // pred_check_branch
        %2436 = sbr.rel (%p2434) target = $region112
      $region111: #{tpu_custom_call.1} parent=5 // pred_region
        %s2437 = ssub.s32 %s27, 2
      $region112: #{tpu_custom_call.1} parent=5 // pred_fallthru
        _
    $region6: #{tpu_custom_call.1} parent=1 // loop_footer
      %s31 = sadd.s32 1, %s27
    $region7: #{tpu_custom_call.1} parent=1 // loop_footer_branch
      %26 = sbr.rel target = $region3
    $region8: #{tpu_custom_call.1} parent=1 // loop_exit
      _
    %2438 = vsyncpa [#allocation4], 1
    %s2439 = scalar_lea.sflag [#allocation4], 1
    %2440 = vsyncpa %s2439, 1
    %2441 = vsyncpa [#allocation7], 1
    %s2442 = scalar_lea.sflag [#allocation7], 1
    %2443 = vsyncpa %s2442, 1
    %2444 = vsyncpa [#allocation10], 1
    %s2445 = scalar_lea.sflag [#allocation10], 1
    %2446 = vsyncpa %s2445, 1
    %2447 = vsyncpa [#allocation5], 1
    %s2448 = scalar_lea.sflag [#allocation5], 1
    %2449 = vsyncpa %s2448, 1

</llo_original>
